<compile_context>
chip_gen: v5e
topology: v5e:2x2
jax: 0.10.0
libtpu: 0.0.40
codegen_flags: <defaults>
</compile_context>

<pallas_src>
import numpy as np
import jax
import jax.numpy as jnp
from jax.experimental import pallas as pl
from jax.experimental.pallas import tpu as pltpu


# ------------------------------ fused kernel -------------------------------


def _mnist_fused_kernel(x_ref, t1_ref, b1_ref, t2_ref, b2_ref,
                        wf1_ref, bf1_ref, wf2_ref, bf2_ref,
                        o_ref, s1_ref):
    f32 = jnp.float32
    bf16 = jnp.bfloat16
    TB = x_ref.shape[0]                                   # images per grid step

    xv = x_ref[...]                                       # (TB, 28, 28) f32

    # ---- conv1 (5x5, 1->6) + bias + ReLU: ONE banded MXU matmul -------------
    # LHS row = (image, output row h); LHS col = (kh, input col wp).
    # t1[kh*28+wp, col(w,co)] = conv1_w[co,0,kh,wp-w]; col = (w%2)*72+(w//2)*6+co.
    a1 = jnp.concatenate([xv[:, kh:kh + 24, :] for kh in range(5)], axis=-1)
    a1 = a1.reshape(TB * 24, 5 * 28)                      # (TB*24, 140)
    y1 = jnp.dot(a1, t1_ref[...], preferred_element_type=f32)   # (TB*24, 144)
    y1 = jnp.maximum(y1 + b1_ref[...], 0.0)
    # maxpool1: W-pool = max of even-w / odd-w column halves (ordering baked
    # into t1); H-pool = sublane-strided reads of a VMEM scratch.
    y1 = jnp.maximum(y1[:, :72], y1[:, 72:])              # (TB*24, 72)
    s1_ref[...] = y1.reshape(TB, 24, 72)
    p1 = jnp.maximum(s1_ref[:, pl.ds(0, 12, 2), :],
                     s1_ref[:, pl.ds(1, 12, 2), :])       # (TB, 12, 72) = (b,h2,w2*6+ci)

    # ---- conv2 (5x5, 6->16) + bias + ReLU: ONE banded bf16 MXU matmul -------
    # t2[kh*72+wp*6+ci, col(w,co)] = conv2_w[co,ci,kh,wp-w]; col = (w%2)*64+(w//2)*16+co.
    a2 = jnp.concatenate([p1[:, kh:kh + 8, :] for kh in range(5)], axis=-1)
    a2 = a2.reshape(TB * 8, 5 * 72).astype(bf16)          # (TB*8, 360), single cast
    y2 = jnp.dot(a2, t2_ref[...], preferred_element_type=f32)   # (TB*8, 128)
    y2 = jnp.maximum(y2 + b2_ref[...], 0.0)
    # maxpool2: W-pool via lane halves, H-pool via adjacent-row max.
    y2 = jnp.maximum(y2[:, :64], y2[:, 64:]).reshape(TB, 8, 64)
    p2 = jnp.concatenate(
        [jnp.maximum(y2[:, 2 * j, :], y2[:, 2 * j + 1, :]) for j in range(4)],
        axis=-1)                                          # (TB, 256), feat = h2*64+w2*16+co

    # ---- fc1 (256 -> 120) + ReLU, fc2 (120 -> 84, lane-padded to 128) -------
    h = jnp.dot(p2.astype(bf16), wf1_ref[...], preferred_element_type=f32)
    h = jnp.maximum(h + bf1_ref[...], 0.0)                # (TB, 120)
    out = jnp.dot(h.astype(bf16), wf2_ref[...], preferred_element_type=f32)
    o_ref[...] = (out + bf2_ref[...]).astype(o_ref.dtype)  # (TB, 128) lane-dense


# ------------------------- trace-time weight prep --------------------------


def _prep_weights(params):
    f32, bf16 = jnp.float32, jnp.bfloat16

    # conv1 -> banded matrix T1 (140, 144).
    w1 = params["conv1_w"].astype(f32)                    # (6, 1, 5, 5)
    kh, kw, w, co = np.meshgrid(np.arange(5), np.arange(5),
                                np.arange(24), np.arange(6), indexing="ij")
    rows = (kh * 28 + w + kw).reshape(-1)
    cols = ((w % 2) * 72 + (w // 2) * 6 + co).reshape(-1)
    vals = jnp.broadcast_to(jnp.transpose(w1[:, 0], (1, 2, 0))[:, :, None, :],
                            (5, 5, 24, 6)).reshape(-1)
    t1 = jnp.zeros((140, 144), f32).at[rows, cols].set(vals)
    b1 = jnp.tile(params["conv1_b"].astype(f32), 24).reshape(1, 144)

    # conv2 -> banded matrix T2 (360, 128), bf16 for the MXU.
    w2 = params["conv2_w"].astype(f32)                    # (16, 6, 5, 5)
    kh, kw, ci, w, co = np.meshgrid(np.arange(5), np.arange(5), np.arange(6),
                                    np.arange(8), np.arange(16), indexing="ij")
    rows = (kh * 72 + (w + kw) * 6 + ci).reshape(-1)
    cols = ((w % 2) * 64 + (w // 2) * 16 + co).reshape(-1)
    vals = jnp.broadcast_to(
        jnp.transpose(w2, (2, 3, 1, 0))[:, :, :, None, :], (5, 5, 6, 8, 16)).reshape(-1)
    t2 = jnp.zeros((360, 128), f32).at[rows, cols].set(vals).astype(bf16)
    b2 = jnp.tile(params["conv2_b"].astype(f32), 8).reshape(1, 128)

    # fc1: torch flat index c*16 + h*4 + w  ->  kernel feature index h*64 + w*16 + c.
    wf1 = params["fc1_w"].astype(f32).reshape(120, 16, 4, 4)     # (n, c, h, w)
    wf1 = jnp.transpose(wf1, (2, 3, 1, 0)).reshape(256, 120).astype(bf16)
    bf1 = params["fc1_b"].reshape(1, 120).astype(f32)

    # fc2: pad N from 84 to 128 (lane-dense output block), zero pad columns.
    wf2 = jnp.zeros((120, 128), f32).at[:, :84].set(params["fc2_w"].T.astype(f32))
    wf2 = wf2.astype(bf16)
    bf2 = jnp.zeros((1, 128), f32).at[:, :84].set(
        params["fc2_b"].astype(f32).reshape(1, 84))
    return t1, b1, t2, b2, wf1, bf1, wf2, bf2


# --------------------------------- wrapper ---------------------------------


def mnist_net_forward(params, x_nchw, tile_b=128):
    """Forward pass of MNISTNet. `tile_b` = images per grid step (static)."""
    B = x_nchw.shape[0]
    assert x_nchw.shape[1:] == (1, 28, 28), x_nchw.shape
    TB = int(min(tile_b, B))
    Bp = ((B + TB - 1) // TB) * TB                        # pad batch to a multiple of TB

    # NCHW -> (B, 28, 28): C == 1, so this is a free reshape (no transpose).
    x = x_nchw.reshape(B, 28, 28).astype(jnp.float32)
    if Bp != B:
        x = jnp.concatenate([x, jnp.zeros((Bp - B, 28, 28), jnp.float32)], axis=0)

    t1, b1, t2, b2, wf1, bf1, wf2, bf2 = _prep_weights(params)

    # Per-step VMEM footprint is ~45 KB * TB; TB<=256 fits the 32 MiB default
    # scoped VMEM on all of v5e/v6e/v7x.  Raise vmem_limit_bytes if you push TB
    # higher on v5e/v6e.
    out = pl.pallas_call(
        _mnist_fused_kernel,
        out_shape=jax.ShapeDtypeStruct((Bp, 128), jnp.float32),
        grid=(Bp // TB,),
        in_specs=[
            pl.BlockSpec((TB, 28, 28), lambda i: (i, 0, 0)),   # images
            pl.BlockSpec((140, 144), lambda i: (0, 0)),        # conv1 banded W
            pl.BlockSpec((1, 144), lambda i: (0, 0)),          # conv1 bias
            pl.BlockSpec((360, 128), lambda i: (0, 0)),        # conv2 banded W
            pl.BlockSpec((1, 128), lambda i: (0, 0)),          # conv2 bias
            pl.BlockSpec((256, 120), lambda i: (0, 0)),        # fc1 W
            pl.BlockSpec((1, 120), lambda i: (0, 0)),          # fc1 bias
            pl.BlockSpec((120, 128), lambda i: (0, 0)),        # fc2 W (padded)
            pl.BlockSpec((1, 128), lambda i: (0, 0)),          # fc2 bias (padded)
        ],
        out_specs=pl.BlockSpec((TB, 128), lambda i: (i, 0)),
        scratch_shapes=[pltpu.VMEM((TB, 24, 72), jnp.float32)],  # conv1 pre-H-pool map
        compiler_params=pltpu.CompilerParams(
            dimension_semantics=("parallel",)),
    )(x, t1, b1, t2, b2, wf1, bf1, wf2, bf2)

    return out[:B, :84]


# ----------------------------- pure-JAX reference ---------------------------


def mnist_net_reference(params, x_nchw):
    x = x_nchw.astype(jnp.float32)
    y = jax.lax.conv_general_dilated(x, params["conv1_w"], (1, 1), "VALID",
                                     dimension_numbers=("NCHW", "OIHW", "NCHW"))
    y = jax.nn.relu(y + params["conv1_b"].reshape(1, 6, 1, 1))
    y = jax.lax.reduce_window(y, -jnp.inf, jax.lax.max,
                              (1, 1, 2, 2), (1, 1, 2, 2), "VALID")
    y = jax.lax.conv_general_dilated(y, params["conv2_w"], (1, 1), "VALID",
                                     dimension_numbers=("NCHW", "OIHW", "NCHW"))
    y = jax.nn.relu(y + params["conv2_b"].reshape(1, 16, 1, 1))
    y = jax.lax.reduce_window(y, -jnp.inf, jax.lax.max,
                              (1, 1, 2, 2), (1, 1, 2, 2), "VALID")
    y = y.reshape(y.shape[0], -1)
    y = jax.nn.relu(y @ params["fc1_w"].T + params["fc1_b"])
    return y @ params["fc2_w"].T + params["fc2_b"]


def init_params(key):
    """Deterministic, PyTorch-default-style uniform(-1/sqrt(fan_in), +) init."""
    ks = jax.random.split(key, 8)

    def u(k, shape, fan_in):
        bound = 1.0 / float(fan_in) ** 0.5
        return jax.random.uniform(k, shape, jnp.float32, -bound, bound)

    return {
        "conv1_w": u(ks[0], (6, 1, 5, 5), 1 * 5 * 5),      # (out, in, kh, kw)
        "conv1_b": u(ks[1], (6,), 1 * 5 * 5),
        "conv2_w": u(ks[2], (16, 6, 5, 5), 6 * 5 * 5),
        "conv2_b": u(ks[3], (16,), 6 * 5 * 5),
        "fc1_w": u(ks[4], (120, 16 * 4 * 4), 16 * 4 * 4),  # (out, in)
        "fc1_b": u(ks[5], (120,), 16 * 4 * 4),
        "fc2_w": u(ks[6], (84, 120), 120),
        "fc2_b": u(ks[7], (84,), 120),
    }


if __name__ == "__main__":
    key = jax.random.PRNGKey(0)
    pkey, xkey = jax.random.split(key)
    params = init_params(pkey)
    # MNIST-shaped input, NCHW like PyTorch: (batch=16, channels=1, 28, 28).
    x = jax.random.normal(xkey, (16, 1, 28, 28), jnp.float32)

    fwd = jax.jit(lambda p, xx: mnist_net_forward(p, xx, tile_b=8))  # grid=(2,)
    out = fwd(params, x)
    jax.block_until_ready(out)
    assert out.shape == (16, 84), out.shape

    ref = mnist_net_reference(params, x)
    max_err = float(jnp.max(jnp.abs(out - ref)))
    scale = float(jnp.max(jnp.abs(ref))) + 1.0
    # bf16 MXU operands -> small relative differences vs. the f32 reference.
    assert max_err < 0.05 * scale, (max_err, scale)

    print("KERNEL_OK")
</pallas_src>

<mosaic_0001>
module attributes {stable_mosaic.version = 11 : i64} {
  func.func @_mnist_fused_kernel(%arg0: i32, %arg1: memref<8x28x28xf32, #tpu.memory_space<vmem>>, %arg2: memref<140x144xf32, #tpu.memory_space<vmem>>, %arg3: memref<1x144xf32, #tpu.memory_space<vmem>>, %arg4: memref<360x128xbf16, #tpu.memory_space<vmem>>, %arg5: memref<1x128xf32, #tpu.memory_space<vmem>>, %arg6: memref<256x120xbf16, #tpu.memory_space<vmem>>, %arg7: memref<1x120xf32, #tpu.memory_space<vmem>>, %arg8: memref<120x128xbf16, #tpu.memory_space<vmem>>, %arg9: memref<1x128xf32, #tpu.memory_space<vmem>>, %arg10: memref<8x128xf32, #tpu.memory_space<vmem>>, %arg11: memref<8x24x72xf32, #tpu.memory_space<vmem>>) attributes {dimension_semantics = [#tpu.dimension_semantics<parallel>], iteration_bounds = array<i64: 2>, scalar_prefetch = 0 : i64, scratch_operands = 1 : i64, tpu.core_type = #tpu.core_type<tc>, window_params = [{transform_indices = @transform_0, window_bounds = array<i64: 8, 28, 28>}, {pipeline_mode = #tpu.pipeline_mode<synchronous>, transform_indices = @transform_1, window_bounds = array<i64: 140, 144>}, {pipeline_mode = #tpu.pipeline_mode<synchronous>, transform_indices = @transform_2, window_bounds = array<i64: 1, 144>}, {pipeline_mode = #tpu.pipeline_mode<synchronous>, transform_indices = @transform_3, window_bounds = array<i64: 360, 128>}, {pipeline_mode = #tpu.pipeline_mode<synchronous>, transform_indices = @transform_4, window_bounds = array<i64: 1, 128>}, {pipeline_mode = #tpu.pipeline_mode<synchronous>, transform_indices = @transform_5, window_bounds = array<i64: 256, 120>}, {pipeline_mode = #tpu.pipeline_mode<synchronous>, transform_indices = @transform_6, window_bounds = array<i64: 1, 120>}, {pipeline_mode = #tpu.pipeline_mode<synchronous>, transform_indices = @transform_7, window_bounds = array<i64: 120, 128>}, {pipeline_mode = #tpu.pipeline_mode<synchronous>, transform_indices = @transform_8, window_bounds = array<i64: 1, 128>}, {transform_indices = @transform_9, window_bounds = array<i64: 8, 128>}]} {
    %c0 = arith.constant 0 : index
    %c0_0 = arith.constant 0 : index
    %c0_1 = arith.constant 0 : index
    %0 = vector.load %arg1[%c0, %c0_0, %c0_1] : memref<8x28x28xf32, #tpu.memory_space<vmem>>, vector<8x28x28xf32>
    %1 = vector.extract_strided_slice %0 {offsets = [0, 0, 0], sizes = [8, 24, 28], strides = [1, 1, 1]} : vector<8x28x28xf32> to vector<8x24x28xf32>
    %2 = vector.extract_strided_slice %0 {offsets = [0, 1, 0], sizes = [8, 24, 28], strides = [1, 1, 1]} : vector<8x28x28xf32> to vector<8x24x28xf32>
    %3 = vector.extract_strided_slice %0 {offsets = [0, 2, 0], sizes = [8, 24, 28], strides = [1, 1, 1]} : vector<8x28x28xf32> to vector<8x24x28xf32>
    %4 = vector.extract_strided_slice %0 {offsets = [0, 3, 0], sizes = [8, 24, 28], strides = [1, 1, 1]} : vector<8x28x28xf32> to vector<8x24x28xf32>
    %5 = vector.extract_strided_slice %0 {offsets = [0, 4, 0], sizes = [8, 24, 28], strides = [1, 1, 1]} : vector<8x28x28xf32> to vector<8x24x28xf32>
    %6 = tpu.concatenate %1, %2, %3, %4, %5 in 2 : vector<8x24x28xf32>, vector<8x24x28xf32>, vector<8x24x28xf32>, vector<8x24x28xf32>, vector<8x24x28xf32> -> vector<8x24x140xf32>
    %7 = vector.shape_cast %6 : vector<8x24x140xf32> to vector<192x140xf32>
    %c0_2 = arith.constant 0 : index
    %c0_3 = arith.constant 0 : index
    %8 = vector.load %arg2[%c0_2, %c0_3] : memref<140x144xf32, #tpu.memory_space<vmem>>, vector<140x144xf32>
    %cst = arith.constant dense<0.000000e+00> : vector<192x144xf32>
    %9 = tpu.matmul %7, %8, %cst {dimension_numbers = #tpu.dot_dimension_numbers<[1], [0], [0], [1], [0, 0, 1, 1], [], []>} : vector<192x140xf32>, vector<140x144xf32>, vector<192x144xf32> -> vector<192x144xf32>
    %c0_4 = arith.constant 0 : index
    %c0_5 = arith.constant 0 : index
    %10 = vector.load %arg3[%c0_4, %c0_5] : memref<1x144xf32, #tpu.memory_space<vmem>>, vector<1x144xf32>
    %11 = vector.broadcast %10 : vector<1x144xf32> to vector<192x144xf32>
    %12 = arith.addf %9, %11 : vector<192x144xf32>
    %cst_6 = arith.constant 0.000000e+00 : f32
    %13 = vector.broadcast %cst_6 : f32 to vector<192x144xf32>
    %14 = arith.maximumf %12, %13 : vector<192x144xf32>
    %15 = vector.extract_strided_slice %14 {offsets = [0, 0], sizes = [192, 72], strides = [1, 1]} : vector<192x144xf32> to vector<192x72xf32>
    %16 = vector.extract_strided_slice %14 {offsets = [0, 72], sizes = [192, 72], strides = [1, 1]} : vector<192x144xf32> to vector<192x72xf32>
    %17 = arith.maximumf %15, %16 : vector<192x72xf32>
    %18 = vector.shape_cast %17 : vector<192x72xf32> to vector<8x24x72xf32>
    %c0_7 = arith.constant 0 : index
    %c0_8 = arith.constant 0 : index
    %c0_9 = arith.constant 0 : index
    %19 = vector.load %arg11[%c0_7, %c0_8, %c0_9] : memref<8x24x72xf32, #tpu.memory_space<vmem>>, vector<8x24x72xf32>
    tpu.vector_store %arg11[%c0_7, %c0_8, %c0_9], %18 {strides = array<i32>} : memref<8x24x72xf32, #tpu.memory_space<vmem>>, vector<8x24x72xf32>,
    %c0_10 = arith.constant 0 : index
    %c0_11 = arith.constant 0 : index
    %c0_12 = arith.constant 0 : index
    %20 = tpu.strided_load %arg11[%c0_10, %c0_11, %c0_12] {strides = array<i32: 1, 2, 1>} : memref<8x24x72xf32, #tpu.memory_space<vmem>>, vector<8x12x72xf32>
    %c0_13 = arith.constant 0 : index
    %c1 = arith.constant 1 : index
    %c0_14 = arith.constant 0 : index
    %21 = tpu.strided_load %arg11[%c0_13, %c1, %c0_14] {strides = array<i32: 1, 2, 1>} : memref<8x24x72xf32, #tpu.memory_space<vmem>>, vector<8x12x72xf32>
    %22 = arith.maximumf %20, %21 : vector<8x12x72xf32>
    %23 = vector.extract_strided_slice %22 {offsets = [0, 0, 0], sizes = [8, 8, 72], strides = [1, 1, 1]} : vector<8x12x72xf32> to vector<8x8x72xf32>
    %24 = vector.extract_strided_slice %22 {offsets = [0, 1, 0], sizes = [8, 8, 72], strides = [1, 1, 1]} : vector<8x12x72xf32> to vector<8x8x72xf32>
    %25 = vector.extract_strided_slice %22 {offsets = [0, 2, 0], sizes = [8, 8, 72], strides = [1, 1, 1]} : vector<8x12x72xf32> to vector<8x8x72xf32>
    %26 = vector.extract_strided_slice %22 {offsets = [0, 3, 0], sizes = [8, 8, 72], strides = [1, 1, 1]} : vector<8x12x72xf32> to vector<8x8x72xf32>
    %27 = vector.extract_strided_slice %22 {offsets = [0, 4, 0], sizes = [8, 8, 72], strides = [1, 1, 1]} : vector<8x12x72xf32> to vector<8x8x72xf32>
    %28 = tpu.concatenate %23, %24, %25, %26, %27 in 2 : vector<8x8x72xf32>, vector<8x8x72xf32>, vector<8x8x72xf32>, vector<8x8x72xf32>, vector<8x8x72xf32> -> vector<8x8x360xf32>
    %29 = vector.shape_cast %28 : vector<8x8x360xf32> to vector<64x360xf32>
    %30 = arith.truncf %29 : vector<64x360xf32> to vector<64x360xbf16>
    %c0_15 = arith.constant 0 : index
    %c0_16 = arith.constant 0 : index
    %31 = vector.load %arg4[%c0_15, %c0_16] : memref<360x128xbf16, #tpu.memory_space<vmem>>, vector<360x128xbf16>
    %cst_17 = arith.constant dense<0.000000e+00> : vector<64x128xf32>
    %32 = tpu.matmul %30, %31, %cst_17 {dimension_numbers = #tpu.dot_dimension_numbers<[1], [0], [0], [1], [0, 0, 1, 1], [], []>} : vector<64x360xbf16>, vector<360x128xbf16>, vector<64x128xf32> -> vector<64x128xf32>
    %c0_18 = arith.constant 0 : index
    %c0_19 = arith.constant 0 : index
    %33 = vector.load %arg5[%c0_18, %c0_19] : memref<1x128xf32, #tpu.memory_space<vmem>>, vector<1x128xf32>
    %34 = vector.broadcast %33 : vector<1x128xf32> to vector<64x128xf32>
    %35 = arith.addf %32, %34 : vector<64x128xf32>
    %cst_20 = arith.constant 0.000000e+00 : f32
    %36 = vector.broadcast %cst_20 : f32 to vector<64x128xf32>
    %37 = arith.maximumf %35, %36 : vector<64x128xf32>
    %38 = vector.extract_strided_slice %37 {offsets = [0, 0], sizes = [64, 64], strides = [1, 1]} : vector<64x128xf32> to vector<64x64xf32>
    %39 = vector.extract_strided_slice %37 {offsets = [0, 64], sizes = [64, 64], strides = [1, 1]} : vector<64x128xf32> to vector<64x64xf32>
    %40 = arith.maximumf %38, %39 : vector<64x64xf32>
    %41 = vector.shape_cast %40 : vector<64x64xf32> to vector<8x8x64xf32>
    %42 = vector.extract_strided_slice %41 {offsets = [0, 0, 0], sizes = [8, 1, 64], strides = [1, 1, 1]} : vector<8x8x64xf32> to vector<8x1x64xf32>
    %43 = vector.shape_cast %42 : vector<8x1x64xf32> to vector<8x64xf32>
    %44 = vector.extract_strided_slice %41 {offsets = [0, 1, 0], sizes = [8, 1, 64], strides = [1, 1, 1]} : vector<8x8x64xf32> to vector<8x1x64xf32>
    %45 = vector.shape_cast %44 : vector<8x1x64xf32> to vector<8x64xf32>
    %46 = arith.maximumf %43, %45 : vector<8x64xf32>
    %47 = vector.extract_strided_slice %41 {offsets = [0, 2, 0], sizes = [8, 1, 64], strides = [1, 1, 1]} : vector<8x8x64xf32> to vector<8x1x64xf32>
    %48 = vector.shape_cast %47 : vector<8x1x64xf32> to vector<8x64xf32>
    %49 = vector.extract_strided_slice %41 {offsets = [0, 3, 0], sizes = [8, 1, 64], strides = [1, 1, 1]} : vector<8x8x64xf32> to vector<8x1x64xf32>
    %50 = vector.shape_cast %49 : vector<8x1x64xf32> to vector<8x64xf32>
    %51 = arith.maximumf %48, %50 : vector<8x64xf32>
    %52 = vector.extract_strided_slice %41 {offsets = [0, 4, 0], sizes = [8, 1, 64], strides = [1, 1, 1]} : vector<8x8x64xf32> to vector<8x1x64xf32>
    %53 = vector.shape_cast %52 : vector<8x1x64xf32> to vector<8x64xf32>
    %54 = vector.extract_strided_slice %41 {offsets = [0, 5, 0], sizes = [8, 1, 64], strides = [1, 1, 1]} : vector<8x8x64xf32> to vector<8x1x64xf32>
    %55 = vector.shape_cast %54 : vector<8x1x64xf32> to vector<8x64xf32>
    %56 = arith.maximumf %53, %55 : vector<8x64xf32>
    %57 = vector.extract_strided_slice %41 {offsets = [0, 6, 0], sizes = [8, 1, 64], strides = [1, 1, 1]} : vector<8x8x64xf32> to vector<8x1x64xf32>
    %58 = vector.shape_cast %57 : vector<8x1x64xf32> to vector<8x64xf32>
    %59 = vector.extract_strided_slice %41 {offsets = [0, 7, 0], sizes = [8, 1, 64], strides = [1, 1, 1]} : vector<8x8x64xf32> to vector<8x1x64xf32>
    %60 = vector.shape_cast %59 : vector<8x1x64xf32> to vector<8x64xf32>
    %61 = arith.maximumf %58, %60 : vector<8x64xf32>
    %62 = tpu.concatenate %46, %51, %56, %61 in 1 : vector<8x64xf32>, vector<8x64xf32>, vector<8x64xf32>, vector<8x64xf32> -> vector<8x256xf32>
    %63 = arith.truncf %62 : vector<8x256xf32> to vector<8x256xbf16>
    %c0_21 = arith.constant 0 : index
    %c0_22 = arith.constant 0 : index
    %64 = vector.load %arg6[%c0_21, %c0_22] : memref<256x120xbf16, #tpu.memory_space<vmem>>, vector<256x120xbf16>
    %cst_23 = arith.constant dense<0.000000e+00> : vector<8x120xf32>
    %65 = tpu.matmul %63, %64, %cst_23 {dimension_numbers = #tpu.dot_dimension_numbers<[1], [0], [0], [1], [0, 0, 1, 1], [], []>} : vector<8x256xbf16>, vector<256x120xbf16>, vector<8x120xf32> -> vector<8x120xf32>
    %c0_24 = arith.constant 0 : index
    %c0_25 = arith.constant 0 : index
    %66 = vector.load %arg7[%c0_24, %c0_25] : memref<1x120xf32, #tpu.memory_space<vmem>>, vector<1x120xf32>
    %67 = vector.broadcast %66 : vector<1x120xf32> to vector<8x120xf32>
    %68 = arith.addf %65, %67 : vector<8x120xf32>
    %cst_26 = arith.constant 0.000000e+00 : f32
    %69 = vector.broadcast %cst_26 : f32 to vector<8x120xf32>
    %70 = arith.maximumf %68, %69 : vector<8x120xf32>
    %71 = arith.truncf %70 : vector<8x120xf32> to vector<8x120xbf16>
    %c0_27 = arith.constant 0 : index
    %c0_28 = arith.constant 0 : index
    %72 = vector.load %arg8[%c0_27, %c0_28] : memref<120x128xbf16, #tpu.memory_space<vmem>>, vector<120x128xbf16>
    %cst_29 = arith.constant dense<0.000000e+00> : vector<8x128xf32>
    %73 = tpu.matmul %71, %72, %cst_29 {dimension_numbers = #tpu.dot_dimension_numbers<[1], [0], [0], [1], [0, 0, 1, 1], [], []>} : vector<8x120xbf16>, vector<120x128xbf16>, vector<8x128xf32> -> vector<8x128xf32>
    %c0_30 = arith.constant 0 : index
    %c0_31 = arith.constant 0 : index
    %74 = vector.load %arg9[%c0_30, %c0_31] : memref<1x128xf32, #tpu.memory_space<vmem>>, vector<1x128xf32>
    %75 = vector.broadcast %74 : vector<1x128xf32> to vector<8x128xf32>
    %76 = arith.addf %73, %75 : vector<8x128xf32>
    %c0_32 = arith.constant 0 : index
    %c0_33 = arith.constant 0 : index
    %77 = vector.load %arg10[%c0_32, %c0_33] : memref<8x128xf32, #tpu.memory_space<vmem>>, vector<8x128xf32>
    tpu.vector_store %arg10[%c0_32, %c0_33], %76 {strides = array<i32>} : memref<8x128xf32, #tpu.memory_space<vmem>>, vector<8x128xf32>,
    return
  }
  func.func @transform_0(%arg0: i32) -> (i32, i32, i32) {
    %c0_i32 = arith.constant 0 : i32
    %c0_i32_0 = arith.constant 0 : i32
    %c0_i32_1 = arith.constant 0 : i32
    return %arg0, %c0_i32, %c0_i32_0 : i32, i32, i32
  }
  func.func @transform_1(%arg0: i32) -> (i32, i32) {
    %c0_i32 = arith.constant 0 : i32
    %c0_i32_0 = arith.constant 0 : i32
    %c0_i32_1 = arith.constant 0 : i32
    return %c0_i32, %c0_i32_0 : i32, i32
  }
  func.func @transform_2(%arg0: i32) -> (i32, i32) {
    %c0_i32 = arith.constant 0 : i32
    %c0_i32_0 = arith.constant 0 : i32
    %c0_i32_1 = arith.constant 0 : i32
    return %c0_i32, %c0_i32_0 : i32, i32
  }
  func.func @transform_3(%arg0: i32) -> (i32, i32) {
    %c0_i32 = arith.constant 0 : i32
    %c0_i32_0 = arith.constant 0 : i32
    %c0_i32_1 = arith.constant 0 : i32
    return %c0_i32, %c0_i32_0 : i32, i32
  }
  func.func @transform_4(%arg0: i32) -> (i32, i32) {
    %c0_i32 = arith.constant 0 : i32
    %c0_i32_0 = arith.constant 0 : i32
    %c0_i32_1 = arith.constant 0 : i32
    return %c0_i32, %c0_i32_0 : i32, i32
  }
  func.func @transform_5(%arg0: i32) -> (i32, i32) {
    %c0_i32 = arith.constant 0 : i32
    %c0_i32_0 = arith.constant 0 : i32
    %c0_i32_1 = arith.constant 0 : i32
    return %c0_i32, %c0_i32_0 : i32, i32
  }
  func.func @transform_6(%arg0: i32) -> (i32, i32) {
    %c0_i32 = arith.constant 0 : i32
    %c0_i32_0 = arith.constant 0 : i32
    %c0_i32_1 = arith.constant 0 : i32
    return %c0_i32, %c0_i32_0 : i32, i32
  }
  func.func @transform_7(%arg0: i32) -> (i32, i32) {
    %c0_i32 = arith.constant 0 : i32
    %c0_i32_0 = arith.constant 0 : i32
    %c0_i32_1 = arith.constant 0 : i32
    return %c0_i32, %c0_i32_0 : i32, i32
  }
  func.func @transform_8(%arg0: i32) -> (i32, i32) {
    %c0_i32 = arith.constant 0 : i32
    %c0_i32_0 = arith.constant 0 : i32
    %c0_i32_1 = arith.constant 0 : i32
    return %c0_i32, %c0_i32_0 : i32, i32
  }
  func.func @transform_9(%arg0: i32) -> (i32, i32) {
    %c0_i32 = arith.constant 0 : i32
    %c0_i32_0 = arith.constant 0 : i32
    return %arg0, %c0_i32 : i32, i32
  }
}

</mosaic_0001>

<llo_original>
// kernel: tile.13
$region0: #{tile.13}
  #allocation0 [shape = 's32[1]{0}', space=sflag, size = 0x4, scoped, tag = 'scoped memory for tile.13']
  %s0 = inlined_call_operand.vmem [shape: f32[6], index: 0, kind: input, shape index: {}]
  %s1 = inlined_call_operand.vmem [shape: f32[24,6], index: 1, kind: output, shape index: {}]
  // Predicated region
  $region2: #{tile.13} parent=0 // pred_check
    _
  $region3: #{tile.13} parent=0 // pred_check_branch
    %3 = sbr.rel (0) target = $region5
  $region4: #{tile.13} parent=0 // pred_region
    _
  $region5: #{tile.13} parent=0 // pred_fallthru
    _
  %v4 = vld [vmem:[%s0] ss:$0 sm:$0xff]
  %5 = vst [vmem:[%s1] sm:$0xff] %v4
  %s6 = scalar_lea.vmem %s1, 8
  %7 = vst [vmem:[%s6] sm:$0xff] %v4
  %s8 = scalar_lea.vmem %s1, 16
  %9 = vst [vmem:[%s8] sm:$0xff] %v4

// kernel: tile.14
$region0: #{tile.14}
  %s0 = inlined_call_operand.vmem [shape: f32[24,6], index: 0, kind: input, shape index: {}]
  %s1 = inlined_call_operand.vmem [shape: f32[1,144], index: 1, kind: output, shape index: {}]
  $region1: #{tile.14} parent=0
    #allocation0 [shape = 'u8[8192]{0}', space=vmem, size = 0x2000, scoped, tag = 'scoped mem for output reshape']
    %v2 = vld [vmem:[%s0] sm:$0x1]
    %vm3 = vcmask 48128
    %4 = vst.msk [vmem:[#allocation0] sm:$0x1] %vm3, %v2
    %s5 = scalar_lea.vmem %s0, 21
    %v6 = vld [vmem:[%s5] sm:$0x1]
    %s7 = scalar_lea.vmem %s0, 21
    %v8 = vld [vmem:[%s7] sm:$0x1]
    %vm9 = vcmask 15360
    %v10 = vsel %vm9, %v8, %v6
    %11 = vrot.lane.b32.xlu0 %v10, 126
    %v12 = vpop.permute.xlu0 %11
    %vm13 = vcmask 31744
    %s14 = scalar_lea.vmem [#allocation0], 8
    %15 = vst.msk [vmem:[%s14] sm:$0x1] %vm13, %v12
    %vm16 = vcmask 1048560
    %17 = vst.msk [vmem:[#allocation0] sm:$0x1] %vm16, %v12
    %s18 = scalar_lea.vmem %s0, 20
    %v19 = vld [vmem:[%s18] sm:$0x1]
    %20 = vrot.lane.b32.xlu0 %v19, 120
    %v21 = vpop.permute.xlu0 %20
    %vm22 = vcmask 1032128
    %23 = vst.msk [vmem:[#allocation0] sm:$0x1] %vm22, %v21
    %s24 = scalar_lea.vmem %s0, 19
    %v25 = vld [vmem:[%s24] sm:$0x1]
    %26 = vrot.lane.b32.xlu0 %v25, 114
    %v27 = vpop.permute.xlu0 %26
    %vm28 = vcmask 982928
    %29 = vst.msk [vmem:[#allocation0] sm:$0x1] %vm28, %v27
    %s30 = scalar_lea.vmem %s0, 18
    %v31 = vld [vmem:[%s30] sm:$0x1]
    %32 = vrot.lane.b32.xlu0 %v31, 108
    %v33 = vpop.permute.xlu0 %32
    %vm34 = vcmask 933728
    %35 = vst.msk [vmem:[#allocation0] sm:$0x1] %vm34, %v33
    %s36 = scalar_lea.vmem %s0, 17
    %v37 = vld [vmem:[%s36] sm:$0x1]
    %38 = vrot.lane.b32.xlu0 %v37, 102
    %v39 = vpop.permute.xlu0 %38
    %vm40 = vcmask 884528
    %41 = vst.msk [vmem:[#allocation0] sm:$0x1] %vm40, %v39
    %s42 = scalar_lea.vmem %s0, 16
    %v43 = vld [vmem:[%s42] sm:$0x1]
    %44 = vrot.lane.b32.xlu0 %v43, 96
    %v45 = vpop.permute.xlu0 %44
    %vm46 = vcmask 835328
    %47 = vst.msk [vmem:[#allocation0] sm:$0x1] %vm46, %v45
    %s48 = scalar_lea.vmem %s0, 15
    %v49 = vld [vmem:[%s48] sm:$0x1]
    %50 = vrot.lane.b32.xlu0 %v49, 90
    %v51 = vpop.permute.xlu0 %50
    %vm52 = vcmask 786128
    %53 = vst.msk [vmem:[#allocation0] sm:$0x1] %vm52, %v51
    %s54 = scalar_lea.vmem %s0, 14
    %v55 = vld [vmem:[%s54] sm:$0x1]
    %56 = vrot.lane.b32.xlu0 %v55, 84
    %v57 = vpop.permute.xlu0 %56
    %vm58 = vcmask 736928
    %59 = vst.msk [vmem:[#allocation0] sm:$0x1] %vm58, %v57
    %s60 = scalar_lea.vmem %s0, 13
    %v61 = vld [vmem:[%s60] sm:$0x1]
    %62 = vrot.lane.b32.xlu0 %v61, 78
    %v63 = vpop.permute.xlu0 %62
    %vm64 = vcmask 687728
    %65 = vst.msk [vmem:[#allocation0] sm:$0x1] %vm64, %v63
    %s66 = scalar_lea.vmem %s0, 12
    %v67 = vld [vmem:[%s66] sm:$0x1]
    %68 = vrot.lane.b32.xlu0 %v67, 72
    %v69 = vpop.permute.xlu0 %68
    %vm70 = vcmask 638528
    %71 = vst.msk [vmem:[#allocation0] sm:$0x1] %vm70, %v69
    %s72 = scalar_lea.vmem %s0, 11
    %v73 = vld [vmem:[%s72] sm:$0x1]
    %74 = vrot.lane.b32.xlu0 %v73, 66
    %v75 = vpop.permute.xlu0 %74
    %vm76 = vcmask 589328
    %77 = vst.msk [vmem:[#allocation0] sm:$0x1] %vm76, %v75
    %s78 = scalar_lea.vmem %s0, 10
    %v79 = vld [vmem:[%s78] sm:$0x1]
    %80 = vrot.lane.b32.xlu0 %v79, 60
    %v81 = vpop.permute.xlu0 %80
    %vm82 = vcmask 540128
    %83 = vst.msk [vmem:[#allocation0] sm:$0x1] %vm82, %v81
    %s84 = scalar_lea.vmem %s0, 9
    %v85 = vld [vmem:[%s84] sm:$0x1]
    %86 = vrot.lane.b32.xlu0 %v85, 54
    %v87 = vpop.permute.xlu0 %86
    %vm88 = vcmask 490928
    %89 = vst.msk [vmem:[#allocation0] sm:$0x1] %vm88, %v87
    %s90 = scalar_lea.vmem %s0, 8
    %v91 = vld [vmem:[%s90] sm:$0x1]
    %92 = vrot.lane.b32.xlu0 %v91, 48
    %v93 = vpop.permute.xlu0 %92
    %vm94 = vcmask 441728
    %95 = vst.msk [vmem:[#allocation0] sm:$0x1] %vm94, %v93
    %s96 = scalar_lea.vmem %s0, 7
    %v97 = vld [vmem:[%s96] sm:$0x1]
    %98 = vrot.lane.b32.xlu0 %v97, 42
    %v99 = vpop.permute.xlu0 %98
    %vm100 = vcmask 392528
    %101 = vst.msk [vmem:[#allocation0] sm:$0x1] %vm100, %v99
    %s102 = scalar_lea.vmem %s0, 6
    %v103 = vld [vmem:[%s102] sm:$0x1]
    %104 = vrot.lane.b32.xlu0 %v103, 36
    %v105 = vpop.permute.xlu0 %104
    %vm106 = vcmask 343328
    %107 = vst.msk [vmem:[#allocation0] sm:$0x1] %vm106, %v105
    %s108 = scalar_lea.vmem %s0, 5
    %v109 = vld [vmem:[%s108] sm:$0x1]
    %110 = vrot.lane.b32.xlu0 %v109, 30
    %v111 = vpop.permute.xlu0 %110
    %vm112 = vcmask 294128
    %113 = vst.msk [vmem:[#allocation0] sm:$0x1] %vm112, %v111
    %s114 = scalar_lea.vmem %s0, 4
    %v115 = vld [vmem:[%s114] sm:$0x1]
    %116 = vrot.lane.b32.xlu0 %v115, 24
    %v117 = vpop.permute.xlu0 %116
    %vm118 = vcmask 244928
    %119 = vst.msk [vmem:[#allocation0] sm:$0x1] %vm118, %v117
    %s120 = scalar_lea.vmem %s0, 3
    %v121 = vld [vmem:[%s120] sm:$0x1]
    %122 = vrot.lane.b32.xlu0 %v121, 18
    %v123 = vpop.permute.xlu0 %122
    %vm124 = vcmask 195728
    %125 = vst.msk [vmem:[#allocation0] sm:$0x1] %vm124, %v123
    %s126 = scalar_lea.vmem %s0, 2
    %v127 = vld [vmem:[%s126] sm:$0x1]
    %128 = vrot.lane.b32.xlu0 %v127, 12
    %v129 = vpop.permute.xlu0 %128
    %vm130 = vcmask 146528
    %131 = vst.msk [vmem:[#allocation0] sm:$0x1] %vm130, %v129
    %s132 = scalar_lea.vmem %s0, 23
    %v133 = vld [vmem:[%s132] sm:$0x1]
    %134 = vrot.lane.b32.xlu0 %v133, 10
    %v135 = vpop.permute.xlu0 %134
    %vm136 = vcmask 130128
    %s137 = scalar_lea.vmem [#allocation0], 8
    %138 = vst.msk [vmem:[%s137] sm:$0x1] %vm136, %v135
    %s139 = scalar_lea.vmem %s0, 1
    %v140 = vld [vmem:[%s139] sm:$0x1]
    %141 = vrot.lane.b32.xlu0 %v140, 6
    %v142 = vpop.permute.xlu0 %141
    %vm143 = vcmask 97328
    %144 = vst.msk [vmem:[#allocation0] sm:$0x1] %vm143, %v142
    %s145 = scalar_lea.vmem %s0, 22
    %v146 = vld [vmem:[%s145] sm:$0x1]
    %147 = vrot.lane.b32.xlu0 %v146, 4
    %v148 = vpop.permute.xlu0 %147
    %vm149 = vcmask 80928
    %s150 = scalar_lea.vmem [#allocation0], 8
    %151 = vst.msk [vmem:[%s150] sm:$0x1] %vm149, %v148
    %s153 = ssub.s32 2, 1
    %v154 = vld [vmem:[#allocation0] sm:%s153]
    %s156 = ssub.s32 2, 1
    %157 = vst [vmem:[%s1] sm:%s156] %v154
    %s158 = scalar_lea.vmem [#allocation0], 8
    %v159 = vld [vmem:[%s158] sm:%s153]
    %s161 = ssub.s32 2, 1
    %s162 = scalar_lea.vmem %s1, 1
    %163 = vst [vmem:[%s162] sm:%s161] %v159

// kernel: tile.18
$region0: #{tile.18}
  #allocation0 [shape = 's32[1]{0}', space=sflag, size = 0x4, scoped, tag = 'scoped memory for tile.18']
  %s0 = inlined_call_operand.vmem [shape: f32[16], index: 0, kind: input, shape index: {}]
  %s1 = inlined_call_operand.vmem [shape: f32[8,16], index: 1, kind: output, shape index: {}]
  // Predicated region
  $region2: #{tile.18} parent=0 // pred_check
    _
  $region3: #{tile.18} parent=0 // pred_check_branch
    %3 = sbr.rel (0) target = $region5
  $region4: #{tile.18} parent=0 // pred_region
    _
  $region5: #{tile.18} parent=0 // pred_fallthru
    _
  %v4 = vld [vmem:[%s0] ss:$0 sm:$0xff]
  %5 = vst [vmem:[%s1] sm:$0xff] %v4

// kernel: tile.19
$region0: #{tile.19}
  %s0 = inlined_call_operand.vmem [shape: f32[8,16], index: 0, kind: input, shape index: {}]
  %s1 = inlined_call_operand.vmem [shape: f32[1,128], index: 1, kind: output, shape index: {}]
  $region1: #{tile.19} parent=0
    #allocation0 [shape = 'u8[4096]{0}', space=vmem, size = 0x1000, scoped, tag = 'scoped mem for output reshape']
    %v2 = vld [vmem:[%s0] sm:$0x1]
    %vm3 = vcmask 130048
    %4 = vst.msk [vmem:[#allocation0] sm:$0x1] %vm3, %v2
    %s5 = scalar_lea.vmem %s0, 7
    %v6 = vld [vmem:[%s5] sm:$0x1]
    %7 = vrot.lane.b32.xlu0 %v6, 112
    %v8 = vpop.permute.xlu0 %7
    %vm9 = vcmask 1048448
    %10 = vst.msk [vmem:[#allocation0] sm:$0x1] %vm9, %v8
    %s11 = scalar_lea.vmem %s0, 6
    %v12 = vld [vmem:[%s11] sm:$0x1]
    %13 = vrot.lane.b32.xlu0 %v12, 96
    %v14 = vpop.permute.xlu0 %13
    %vm15 = vcmask 917248
    %16 = vst.msk [vmem:[#allocation0] sm:$0x1] %vm15, %v14
    %s17 = scalar_lea.vmem %s0, 5
    %v18 = vld [vmem:[%s17] sm:$0x1]
    %19 = vrot.lane.b32.xlu0 %v18, 80
    %v20 = vpop.permute.xlu0 %19
    %vm21 = vcmask 786048
    %22 = vst.msk [vmem:[#allocation0] sm:$0x1] %vm21, %v20
    %s23 = scalar_lea.vmem %s0, 4
    %v24 = vld [vmem:[%s23] sm:$0x1]
    %25 = vrot.lane.b32.xlu0 %v24, 64
    %v26 = vpop.permute.xlu0 %25
    %vm27 = vcmask 654848
    %28 = vst.msk [vmem:[#allocation0] sm:$0x1] %vm27, %v26
    %s29 = scalar_lea.vmem %s0, 3
    %v30 = vld [vmem:[%s29] sm:$0x1]
    %31 = vrot.lane.b32.xlu0 %v30, 48
    %v32 = vpop.permute.xlu0 %31
    %vm33 = vcmask 523648
    %34 = vst.msk [vmem:[#allocation0] sm:$0x1] %vm33, %v32
    %s35 = scalar_lea.vmem %s0, 2
    %v36 = vld [vmem:[%s35] sm:$0x1]
    %37 = vrot.lane.b32.xlu0 %v36, 32
    %v38 = vpop.permute.xlu0 %37
    %vm39 = vcmask 392448
    %40 = vst.msk [vmem:[#allocation0] sm:$0x1] %vm39, %v38
    %s41 = scalar_lea.vmem %s0, 1
    %v42 = vld [vmem:[%s41] sm:$0x1]
    %43 = vrot.lane.b32.xlu0 %v42, 16
    %v44 = vpop.permute.xlu0 %43
    %vm45 = vcmask 261248
    %46 = vst.msk [vmem:[#allocation0] sm:$0x1] %vm45, %v44
    %s48 = ssub.s32 2, 1
    %v49 = vld [vmem:[#allocation0] sm:%s48]
    %s51 = ssub.s32 2, 1
    %52 = vst [vmem:[%s1] sm:%s51] %v49

// kernel: _lambda_.1
$region0: #{_lambda_.1}
  #allocation0 [shape = 'u32[]', space=smem, size = 0x4, offset = 0x4, fixed_abs, tag = 'smem constant byte address 0x4 - core index']
  #allocation1 [shape = 'u32[72,128]{1,0:T(1,128)}', space=vmem, size = 0x9000, scoped, tag = 'internal scratch']
  #allocation2 [shape = 'f32[8,24,72]{2,1,0:T(8,128)}', space=vmem, size = 0x18000, scoped, tag = 'scratch operand']
  %s0 = inlined_call_operand.vmem [shape: f32[16,28,28], index: 0, kind: input, shape index: {}]
  %s1 = inlined_call_operand.vmem [shape: f32[140,144], index: 1, kind: input, shape index: {}]
  %s2 = inlined_call_operand.vmem [shape: f32[1,144], index: 2, kind: input, shape index: {}]
  %s3 = inlined_call_operand.vmem [shape: bf16[360,128], index: 3, kind: input, shape index: {}]
  %s4 = inlined_call_operand.vmem [shape: f32[1,128], index: 4, kind: input, shape index: {}]
  %s5 = inlined_call_operand.vmem [shape: bf16[256,120], index: 5, kind: input, shape index: {}]
  %s6 = inlined_call_operand.vmem [shape: f32[1,120], index: 6, kind: input, shape index: {}]
  %s7 = inlined_call_operand.vmem [shape: bf16[120,128], index: 7, kind: input, shape index: {}]
  %s8 = inlined_call_operand.vmem [shape: f32[1,128], index: 8, kind: input, shape index: {}]
  %s9 = inlined_call_operand.hbm [shape: f32[16,128], index: 9, kind: output, shape index: {}]
  %s10 = sld [smem:[#allocation0]]
  $region69: #{_lambda_.1} parent=0
    _
  %s12 = ssub.s32 1, %s10
  %s13 = scalar_select 0, %s12, %s10
  $region1: #{_lambda_.1} parent=0
    #allocation3 [shape = 'u8[8192]{0}', space=vmem, size = 0x2000, scoped, tag = 'output window, operand 0']
    #allocation4 [shape = 's32[2]{0}', space=sflag, size = 0x8, scoped, tag = 'scoped memory for _lambda_.1']
    %14 = vsyncpa [#allocation4], 0
    %s15 = scalar_lea.sflag [#allocation4], 1
    %16 = vsyncpa %s15, 0
    loop: start=0, step=1, limit=4
    $region2: #{_lambda_.1} parent=1 // loop_pre_header
      _
    $region3: #{_lambda_.1} parent=1 // loop_header
      %s18 = sphi 0, %s22
      %p19 = scmp.ge.s32.totalorder %s18, 4
      %s28 = sphi 0, %s30
      %s31 = sphi 0, %s28
      %s32 = sphi 0, %s31
      %s48 = sphi 0, %s32
      %s52 = sphi 0, %s52
      %s54 = sphi 0, %s52
      %s55 = sphi 0, %s54
      %s69 = sphi 0, %s55
      %s73 = sphi 0, %s73
      %s75 = sphi 0, %s73
      %s76 = sphi 0, %s75
      %s90 = sphi 0, %s76
      %s94 = sphi 0, %s94
      %s96 = sphi 0, %s94
      %s97 = sphi 0, %s96
      %s111 = sphi 0, %s97
      %s115 = sphi 0, %s115
      %s117 = sphi 0, %s115
      %s118 = sphi 0, %s117
      %s132 = sphi 0, %s118
      %s136 = sphi 0, %s136
      %s138 = sphi 0, %s136
      %s139 = sphi 0, %s138
      %s153 = sphi 0, %s139
      %s157 = sphi 0, %s157
      %s159 = sphi 0, %s157
      %s160 = sphi 0, %s159
      %s174 = sphi 0, %s160
      %s178 = sphi 0, %s178
      %s180 = sphi 0, %s178
      %s181 = sphi 0, %s180
      %s195 = sphi 0, %s181
      %s199 = sphi 0, %s199
      %s201 = sphi 0, %s199
      %s202 = sphi 0, %s201
      %s216 = sphi 0, %s202
      %s222 = sphi 0, %s224
      %s225 = sphi 0, %s222
      %s226 = sphi 0, %s225
      %s242 = sphi 0, %s226
    $region4: #{_lambda_.1} parent=1 // loop_header_branch
      %21 = sbr.rel (%p19) target = $region8
    $region5: #{_lambda_.1} parent=1 // loop_body
      %s23 = ssub.s32 %s18, 1
      %s24 = ssub.s32 %s18, 2
      %s25 = sadd.s32 %s18, 1
      %s26 = ssub.s32 %s18, %s25
      %p27 = scmp.eq.s32.totalorder %s26, 0
      %s29 = sadd.s32 %s28, 1
      %s30 = scalar_select %p27, %s28, %s29
      %p33 = pneg %p27
      %p34 = scmp.eq.s32.totalorder %s18, 1
      %p35 = por %p33, %p34
      %p36 = scmp.ne.s32.totalorder %s28, %s31
      %p37 = scmp.eq.s32.totalorder %s18, 0
      %p38 = por %p36, %p37
      %p39 = scmp.ne.s32.totalorder %s28, %s31
      %p40 = scmp.eq.s32.totalorder %s23, 1
      %p41 = por %p39, %p40
      %p42 = scmp.ne.s32.totalorder %s31, %s32
      %p43 = scmp.eq.s32.totalorder %s23, 0
      %p44 = por %p42, %p43
      %p45 = scmp.ne.s32.totalorder %s31, %s32
      %p46 = scmp.eq.s32.totalorder %s24, 1
      %p47 = por %p45, %p46
      %p49 = scmp.ne.s32.totalorder %s32, %s48
      %p50 = scmp.eq.s32.totalorder %s24, 0
      %p51 = por %p49, %p50
      %s53 = sadd.s32 %s52, 1
      %p56 = scmp.eq.s32.totalorder %s18, 1
      %p57 = scmp.ne.s32.totalorder %s52, %s54
      %p58 = scmp.eq.s32.totalorder %s18, 0
      %p59 = por %p57, %p58
      %p60 = scmp.ne.s32.totalorder %s52, %s54
      %p61 = scmp.eq.s32.totalorder %s23, 1
      %p62 = por %p60, %p61
      %p63 = scmp.ne.s32.totalorder %s54, %s55
      %p64 = scmp.eq.s32.totalorder %s23, 0
      %p65 = por %p63, %p64
      %p66 = scmp.ne.s32.totalorder %s54, %s55
      %p67 = scmp.eq.s32.totalorder %s24, 1
      %p68 = por %p66, %p67
      %p70 = scmp.ne.s32.totalorder %s55, %s69
      %p71 = scmp.eq.s32.totalorder %s24, 0
      %p72 = por %p70, %p71
      %s74 = sadd.s32 %s73, 1
      %p77 = scmp.eq.s32.totalorder %s18, 1
      %p78 = scmp.ne.s32.totalorder %s73, %s75
      %p79 = scmp.eq.s32.totalorder %s18, 0
      %p80 = por %p78, %p79
      %p81 = scmp.ne.s32.totalorder %s73, %s75
      %p82 = scmp.eq.s32.totalorder %s23, 1
      %p83 = por %p81, %p82
      %p84 = scmp.ne.s32.totalorder %s75, %s76
      %p85 = scmp.eq.s32.totalorder %s23, 0
      %p86 = por %p84, %p85
      %p87 = scmp.ne.s32.totalorder %s75, %s76
      %p88 = scmp.eq.s32.totalorder %s24, 1
      %p89 = por %p87, %p88
      %p91 = scmp.ne.s32.totalorder %s76, %s90
      %p92 = scmp.eq.s32.totalorder %s24, 0
      %p93 = por %p91, %p92
      %s95 = sadd.s32 %s94, 1
      %p98 = scmp.eq.s32.totalorder %s18, 1
      %p99 = scmp.ne.s32.totalorder %s94, %s96
      %p100 = scmp.eq.s32.totalorder %s18, 0
      %p101 = por %p99, %p100
      %p102 = scmp.ne.s32.totalorder %s94, %s96
      %p103 = scmp.eq.s32.totalorder %s23, 1
      %p104 = por %p102, %p103
      %p105 = scmp.ne.s32.totalorder %s96, %s97
      %p106 = scmp.eq.s32.totalorder %s23, 0
      %p107 = por %p105, %p106
      %p108 = scmp.ne.s32.totalorder %s96, %s97
      %p109 = scmp.eq.s32.totalorder %s24, 1
      %p110 = por %p108, %p109
      %p112 = scmp.ne.s32.totalorder %s97, %s111
      %p113 = scmp.eq.s32.totalorder %s24, 0
      %p114 = por %p112, %p113
      %s116 = sadd.s32 %s115, 1
      %p119 = scmp.eq.s32.totalorder %s18, 1
      %p120 = scmp.ne.s32.totalorder %s115, %s117
      %p121 = scmp.eq.s32.totalorder %s18, 0
      %p122 = por %p120, %p121
      %p123 = scmp.ne.s32.totalorder %s115, %s117
      %p124 = scmp.eq.s32.totalorder %s23, 1
      %p125 = por %p123, %p124
      %p126 = scmp.ne.s32.totalorder %s117, %s118
      %p127 = scmp.eq.s32.totalorder %s23, 0
      %p128 = por %p126, %p127
      %p129 = scmp.ne.s32.totalorder %s117, %s118
      %p130 = scmp.eq.s32.totalorder %s24, 1
      %p131 = por %p129, %p130
      %p133 = scmp.ne.s32.totalorder %s118, %s132
      %p134 = scmp.eq.s32.totalorder %s24, 0
      %p135 = por %p133, %p134
      %s137 = sadd.s32 %s136, 1
      %p140 = scmp.eq.s32.totalorder %s18, 1
      %p141 = scmp.ne.s32.totalorder %s136, %s138
      %p142 = scmp.eq.s32.totalorder %s18, 0
      %p143 = por %p141, %p142
      %p144 = scmp.ne.s32.totalorder %s136, %s138
      %p145 = scmp.eq.s32.totalorder %s23, 1
      %p146 = por %p144, %p145
      %p147 = scmp.ne.s32.totalorder %s138, %s139
      %p148 = scmp.eq.s32.totalorder %s23, 0
      %p149 = por %p147, %p148
      %p150 = scmp.ne.s32.totalorder %s138, %s139
      %p151 = scmp.eq.s32.totalorder %s24, 1
      %p152 = por %p150, %p151
      %p154 = scmp.ne.s32.totalorder %s139, %s153
      %p155 = scmp.eq.s32.totalorder %s24, 0
      %p156 = por %p154, %p155
      %s158 = sadd.s32 %s157, 1
      %p161 = scmp.eq.s32.totalorder %s18, 1
      %p162 = scmp.ne.s32.totalorder %s157, %s159
      %p163 = scmp.eq.s32.totalorder %s18, 0
      %p164 = por %p162, %p163
      %p165 = scmp.ne.s32.totalorder %s157, %s159
      %p166 = scmp.eq.s32.totalorder %s23, 1
      %p167 = por %p165, %p166
      %p168 = scmp.ne.s32.totalorder %s159, %s160
      %p169 = scmp.eq.s32.totalorder %s23, 0
      %p170 = por %p168, %p169
      %p171 = scmp.ne.s32.totalorder %s159, %s160
      %p172 = scmp.eq.s32.totalorder %s24, 1
      %p173 = por %p171, %p172
      %p175 = scmp.ne.s32.totalorder %s160, %s174
      %p176 = scmp.eq.s32.totalorder %s24, 0
      %p177 = por %p175, %p176
      %s179 = sadd.s32 %s178, 1
      %p182 = scmp.eq.s32.totalorder %s18, 1
      %p183 = scmp.ne.s32.totalorder %s178, %s180
      %p184 = scmp.eq.s32.totalorder %s18, 0
      %p185 = por %p183, %p184
      %p186 = scmp.ne.s32.totalorder %s178, %s180
      %p187 = scmp.eq.s32.totalorder %s23, 1
      %p188 = por %p186, %p187
      %p189 = scmp.ne.s32.totalorder %s180, %s181
      %p190 = scmp.eq.s32.totalorder %s23, 0
      %p191 = por %p189, %p190
      %p192 = scmp.ne.s32.totalorder %s180, %s181
      %p193 = scmp.eq.s32.totalorder %s24, 1
      %p194 = por %p192, %p193
      %p196 = scmp.ne.s32.totalorder %s181, %s195
      %p197 = scmp.eq.s32.totalorder %s24, 0
      %p198 = por %p196, %p197
      %s200 = sadd.s32 %s199, 1
      %p203 = scmp.eq.s32.totalorder %s18, 1
      %p204 = scmp.ne.s32.totalorder %s199, %s201
      %p205 = scmp.eq.s32.totalorder %s18, 0
      %p206 = por %p204, %p205
      %p207 = scmp.ne.s32.totalorder %s199, %s201
      %p208 = scmp.eq.s32.totalorder %s23, 1
      %p209 = por %p207, %p208
      %p210 = scmp.ne.s32.totalorder %s201, %s202
      %p211 = scmp.eq.s32.totalorder %s23, 0
      %p212 = por %p210, %p211
      %p213 = scmp.ne.s32.totalorder %s201, %s202
      %p214 = scmp.eq.s32.totalorder %s24, 1
      %p215 = por %p213, %p214
      %p217 = scmp.ne.s32.totalorder %s202, %s216
      %p218 = scmp.eq.s32.totalorder %s24, 0
      %p219 = por %p217, %p218
      %s220 = ssub.s32 %s18, %s25
      %p221 = scmp.eq.s32.totalorder %s220, 0
      %s223 = sadd.s32 %s222, 1
      %s224 = scalar_select %p221, %s222, %s223
      %p227 = pneg %p221
      %p228 = scmp.eq.s32.totalorder %s18, 1
      %p229 = por %p227, %p228
      %p230 = scmp.ne.s32.totalorder %s222, %s225
      %p231 = scmp.eq.s32.totalorder %s18, 0
      %p232 = por %p230, %p231
      %p233 = scmp.ne.s32.totalorder %s222, %s225
      %p234 = scmp.eq.s32.totalorder %s23, 1
      %p235 = por %p233, %p234
      %p236 = scmp.ne.s32.totalorder %s225, %s226
      %p237 = scmp.eq.s32.totalorder %s23, 0
      %p238 = por %p236, %p237
      %p239 = scmp.ne.s32.totalorder %s225, %s226
      %p240 = scmp.eq.s32.totalorder %s24, 1
      %p241 = por %p239, %p240
      %p243 = scmp.ne.s32.totalorder %s226, %s242
      %p244 = scmp.eq.s32.totalorder %s24, 0
      %p245 = por %p243, %p244
      %p246 = scmp.le.s32.totalorder 1, %s18
      %p247 = scmp.lt.s32.totalorder %s18, 3
      %p248 = pnand %p246, %p247
      %p249 = pneg %p248
      // Predicated region
      $region9: #{_lambda_.1} parent=5 // pred_check
        _
      $region10: #{_lambda_.1} parent=5 // pred_check_branch
        %251 = sbr.rel (%p248) target = $region12
      $region11: #{_lambda_.1} parent=5 // pred_region
        %s252 = ssub.s32 %s18, 1
        // Predicated region
        $region13: #{_lambda_.1} parent=11 // pred_check
          %p253 = pneg %p65
        $region14: #{_lambda_.1} parent=11 // pred_check_branch
          %255 = sbr.rel (%p253) target = $region16
        $region15: #{_lambda_.1} parent=11 // pred_region
          _
        $region16: #{_lambda_.1} parent=11 // pred_fallthru
          _
        // Predicated region
        $region17: #{_lambda_.1} parent=11 // pred_check
          %p256 = pneg %p86
        $region18: #{_lambda_.1} parent=11 // pred_check_branch
          %258 = sbr.rel (%p256) target = $region20
        $region19: #{_lambda_.1} parent=11 // pred_region
          _
        $region20: #{_lambda_.1} parent=11 // pred_fallthru
          _
        // Predicated region
        $region21: #{_lambda_.1} parent=11 // pred_check
          %p259 = pneg %p107
        $region22: #{_lambda_.1} parent=11 // pred_check_branch
          %261 = sbr.rel (%p259) target = $region24
        $region23: #{_lambda_.1} parent=11 // pred_region
          _
        $region24: #{_lambda_.1} parent=11 // pred_fallthru
          _
        // Predicated region
        $region25: #{_lambda_.1} parent=11 // pred_check
          %p262 = pneg %p128
        $region26: #{_lambda_.1} parent=11 // pred_check_branch
          %264 = sbr.rel (%p262) target = $region28
        $region27: #{_lambda_.1} parent=11 // pred_region
          _
        $region28: #{_lambda_.1} parent=11 // pred_fallthru
          _
        // Predicated region
        $region29: #{_lambda_.1} parent=11 // pred_check
          %p265 = pneg %p149
        $region30: #{_lambda_.1} parent=11 // pred_check_branch
          %267 = sbr.rel (%p265) target = $region32
        $region31: #{_lambda_.1} parent=11 // pred_region
          _
        $region32: #{_lambda_.1} parent=11 // pred_fallthru
          _
        // Predicated region
        $region33: #{_lambda_.1} parent=11 // pred_check
          %p268 = pneg %p170
        $region34: #{_lambda_.1} parent=11 // pred_check_branch
          %270 = sbr.rel (%p268) target = $region36
        $region35: #{_lambda_.1} parent=11 // pred_region
          _
        $region36: #{_lambda_.1} parent=11 // pred_fallthru
          _
        // Predicated region
        $region37: #{_lambda_.1} parent=11 // pred_check
          %p271 = pneg %p191
        $region38: #{_lambda_.1} parent=11 // pred_check_branch
          %273 = sbr.rel (%p271) target = $region40
        $region39: #{_lambda_.1} parent=11 // pred_region
          _
        $region40: #{_lambda_.1} parent=11 // pred_fallthru
          _
        // Predicated region
        $region41: #{_lambda_.1} parent=11 // pred_check
          %p274 = pneg %p212
        $region42: #{_lambda_.1} parent=11 // pred_check_branch
          %276 = sbr.rel (%p274) target = $region44
        $region43: #{_lambda_.1} parent=11 // pred_region
          _
        $region44: #{_lambda_.1} parent=11 // pred_fallthru
          _
      $region12: #{_lambda_.1} parent=5 // pred_fallthru
        _
      %p277 = scmp.lt.s32.totalorder %s18, 2
      // Predicated region
      $region45: #{_lambda_.1} parent=5 // pred_check
        %p278 = pneg %p277
      $region46: #{_lambda_.1} parent=5 // pred_check_branch
        %280 = sbr.rel (%p278) target = $region48
      $region47: #{_lambda_.1} parent=5 // pred_region
        // Predicated region
        $region49: #{_lambda_.1} parent=47 // pred_check
          %p281 = pneg %p38
        $region50: #{_lambda_.1} parent=47 // pred_check_branch
          %283 = sbr.rel (%p281) target = $region52
        $region51: #{_lambda_.1} parent=47 // pred_region
          %s284 = smul.u32 8, %s18
          %p285 = scmp.lt.s32.totalorder %s284, 15
          %s286 = scalar_select %p285, %s284, 15
          %s287 = smul.addr %s286, 4
          %s288 = smul.addr %s287, 8
          %s289 = scalar_lea.vmem %s0, %s288
          %s290 = smul.u32 8, %s18
        $region52: #{_lambda_.1} parent=47 // pred_fallthru
          _
      $region48: #{_lambda_.1} parent=5 // pred_fallthru
        _
      %p291 = scmp.le.s32.totalorder 1, %s18
      %p292 = scmp.lt.s32.totalorder %s18, 3
      %p293 = pnand %p291, %p292
      %p294 = pneg %p293
      // Predicated region
      $region53: #{_lambda_.1} parent=5 // pred_check
        _
      $region54: #{_lambda_.1} parent=5 // pred_check_branch
        %296 = sbr.rel (%p293) target = $region56
      $region55: #{_lambda_.1} parent=5 // pred_region
        %s297 = ssub.s32 %s18, 1
        %s298 = smul.u32 8, %s23
        %p299 = scmp.lt.s32.totalorder %s298, 15
        %s300 = scalar_select %p299, %s298, 15
        %s301 = smul.addr %s300, 4
        %s302 = smul.addr %s301, 8
        %s303 = scalar_lea.vmem %s0, %s302
        %p304 = pneg %p44
        %p305 = pneg %p41
        %p306 = pneg %p65
        %p307 = pneg %p62
        %p308 = pneg %p86
        %p309 = pneg %p83
        %p310 = pneg %p107
        %p311 = pneg %p104
        %p312 = pneg %p128
        %p313 = pneg %p125
        %p314 = pneg %p149
        %p315 = pneg %p146
        %p316 = pneg %p170
        %p317 = pneg %p167
        %p318 = pneg %p191
        %p319 = pneg %p188
        %p320 = pneg %p212
        %p321 = pneg %p209
        %p322 = pneg %p238
        %p323 = pneg %p235
        %s324 = sand.u32 %s225, 1
        %s325 = scalar_lea.sflag [#allocation4], %s324
        %s326 = sand.u32 %s225, 1
        %s327 = smul.addr %s326, 8
        %s328 = scalar_lea.vmem [#allocation3], %s327
        %s329 = smul.u32 8, %s23
        %p330 = scmp.lt.s32.totalorder %s329, 15
        %s331 = scalar_select %p330, %s329, 15
        %s332 = smul.addr %s331, 4
        %s333 = smul.addr %s332, 8
        %s334 = scalar_lea.vmem %s0, %s333
        %s335 = smul.u32 8, %s23
        %v337 = vld [vmem:[%s334] sm:$0xff]
        %v338 = vld [vmem:[%s334 + $0x8] sm:$0xff]
        %v339 = vld [vmem:[%s334 + $0x10] sm:$0xff]
        %v340 = vld [vmem:[%s334 + $0x18] sm:$0xf]
        %v341 = vld [vmem:[%s334 + $0x20] sm:$0xff]
        %v342 = vld [vmem:[%s334 + $0x28] sm:$0xff]
        %v343 = vld [vmem:[%s334 + $0x30] sm:$0xff]
        %v344 = vld [vmem:[%s334 + $0x38] sm:$0xf]
        %v345 = vld [vmem:[%s334 + $0x40] sm:$0xff]
        %v346 = vld [vmem:[%s334 + $0x48] sm:$0xff]
        %v347 = vld [vmem:[%s334 + $0x50] sm:$0xff]
        %v348 = vld [vmem:[%s334 + $0x58] sm:$0xf]
        %v349 = vld [vmem:[%s334 + $0x60] sm:$0xff]
        %v350 = vld [vmem:[%s334 + $0x68] sm:$0xff]
        %v351 = vld [vmem:[%s334 + $0x70] sm:$0xff]
        %v352 = vld [vmem:[%s334 + $0x78] sm:$0xf]
        %v353 = vld [vmem:[%s334 + $0x80] sm:$0xff]
        %v354 = vld [vmem:[%s334 + $0x88] sm:$0xff]
        %v355 = vld [vmem:[%s334 + $0x90] sm:$0xff]
        %v356 = vld [vmem:[%s334 + $0x98] sm:$0xf]
        %v357 = vld [vmem:[%s334 + $0xa0] sm:$0xff]
        %v358 = vld [vmem:[%s334 + $0xa8] sm:$0xff]
        %v359 = vld [vmem:[%s334 + $0xb0] sm:$0xff]
        %v360 = vld [vmem:[%s334 + $0xb8] sm:$0xf]
        %v361 = vld [vmem:[%s334 + $0xc0] sm:$0xff]
        %v362 = vld [vmem:[%s334 + $0xc8] sm:$0xff]
        %v363 = vld [vmem:[%s334 + $0xd0] sm:$0xff]
        %v364 = vld [vmem:[%s334 + $0xd8] sm:$0xf]
        %v365 = vld [vmem:[%s334 + $0xe0] sm:$0xff]
        %v366 = vld [vmem:[%s334 + $0xe8] sm:$0xff]
        %v367 = vld [vmem:[%s334 + $0xf0] sm:$0xff]
        %v368 = vld [vmem:[%s334 + $0xf8] sm:$0xf]
        %vm401 = vcmask 1046528
        %v402 = vrot.slane %v337, 1
        %v403 = vrot.slane %v338, 1
        %v404 = vsel %vm401, %v402, %v403
        %v405 = vrot.slane %v339, 1
        %v406 = vsel %vm401, %v403, %v405
        %v407 = vrot.slane %v340, 1
        %v408 = vsel %vm401, %v405, %v407
        %v409 = vrot.slane %v341, 1
        %v410 = vrot.slane %v342, 1
        %v411 = vsel %vm401, %v409, %v410
        %v412 = vrot.slane %v343, 1
        %v413 = vsel %vm401, %v410, %v412
        %v414 = vrot.slane %v344, 1
        %v415 = vsel %vm401, %v412, %v414
        %v416 = vrot.slane %v345, 1
        %v417 = vrot.slane %v346, 1
        %v418 = vsel %vm401, %v416, %v417
        %v419 = vrot.slane %v347, 1
        %v420 = vsel %vm401, %v417, %v419
        %v421 = vrot.slane %v348, 1
        %v422 = vsel %vm401, %v419, %v421
        %v423 = vrot.slane %v349, 1
        %v424 = vrot.slane %v350, 1
        %v425 = vsel %vm401, %v423, %v424
        %v426 = vrot.slane %v351, 1
        %v427 = vsel %vm401, %v424, %v426
        %v428 = vrot.slane %v352, 1
        %v429 = vsel %vm401, %v426, %v428
        %v430 = vrot.slane %v353, 1
        %v431 = vrot.slane %v354, 1
        %v432 = vsel %vm401, %v430, %v431
        %v433 = vrot.slane %v355, 1
        %v434 = vsel %vm401, %v431, %v433
        %v435 = vrot.slane %v356, 1
        %v436 = vsel %vm401, %v433, %v435
        %v437 = vrot.slane %v357, 1
        %v438 = vrot.slane %v358, 1
        %v439 = vsel %vm401, %v437, %v438
        %v440 = vrot.slane %v359, 1
        %v441 = vsel %vm401, %v438, %v440
        %v442 = vrot.slane %v360, 1
        %v443 = vsel %vm401, %v440, %v442
        %v444 = vrot.slane %v361, 1
        %v445 = vrot.slane %v362, 1
        %v446 = vsel %vm401, %v444, %v445
        %v447 = vrot.slane %v363, 1
        %v448 = vsel %vm401, %v445, %v447
        %v449 = vrot.slane %v364, 1
        %v450 = vsel %vm401, %v447, %v449
        %v451 = vrot.slane %v365, 1
        %v452 = vrot.slane %v366, 1
        %v453 = vsel %vm401, %v451, %v452
        %v454 = vrot.slane %v367, 1
        %v455 = vsel %vm401, %v452, %v454
        %v456 = vrot.slane %v368, 1
        %v457 = vsel %vm401, %v454, %v456
        %458 = vrot.lane.b32.xlu0 %v404, 28
        %v459 = vpop.permute.xlu0 %458
        %460 = vrot.lane.b32.xlu0 %v406, 28
        %v461 = vpop.permute.xlu0 %460
        %462 = vrot.lane.b32.xlu0 %v408, 28
        %v463 = vpop.permute.xlu0 %462
        %464 = vrot.lane.b32.xlu0 %v411, 28
        %v465 = vpop.permute.xlu0 %464
        %466 = vrot.lane.b32.xlu0 %v413, 28
        %v467 = vpop.permute.xlu0 %466
        %468 = vrot.lane.b32.xlu0 %v415, 28
        %v469 = vpop.permute.xlu0 %468
        %470 = vrot.lane.b32.xlu0 %v418, 28
        %v471 = vpop.permute.xlu0 %470
        %472 = vrot.lane.b32.xlu0 %v420, 28
        %v473 = vpop.permute.xlu0 %472
        %474 = vrot.lane.b32.xlu0 %v422, 28
        %v475 = vpop.permute.xlu0 %474
        %476 = vrot.lane.b32.xlu0 %v425, 28
        %v477 = vpop.permute.xlu0 %476
        %478 = vrot.lane.b32.xlu0 %v427, 28
        %v479 = vpop.permute.xlu0 %478
        %480 = vrot.lane.b32.xlu0 %v429, 28
        %v481 = vpop.permute.xlu0 %480
        %482 = vrot.lane.b32.xlu0 %v432, 28
        %v483 = vpop.permute.xlu0 %482
        %484 = vrot.lane.b32.xlu0 %v434, 28
        %v485 = vpop.permute.xlu0 %484
        %486 = vrot.lane.b32.xlu0 %v436, 28
        %v487 = vpop.permute.xlu0 %486
        %488 = vrot.lane.b32.xlu0 %v439, 28
        %v489 = vpop.permute.xlu0 %488
        %490 = vrot.lane.b32.xlu0 %v441, 28
        %v491 = vpop.permute.xlu0 %490
        %492 = vrot.lane.b32.xlu0 %v443, 28
        %v493 = vpop.permute.xlu0 %492
        %494 = vrot.lane.b32.xlu0 %v446, 28
        %v495 = vpop.permute.xlu0 %494
        %496 = vrot.lane.b32.xlu0 %v448, 28
        %v497 = vpop.permute.xlu0 %496
        %498 = vrot.lane.b32.xlu0 %v450, 28
        %v499 = vpop.permute.xlu0 %498
        %500 = vrot.lane.b32.xlu0 %v453, 28
        %v501 = vpop.permute.xlu0 %500
        %502 = vrot.lane.b32.xlu0 %v455, 28
        %v503 = vpop.permute.xlu0 %502
        %504 = vrot.lane.b32.xlu0 %v457, 28
        %v505 = vpop.permute.xlu0 %504
        %vm530 = vcmask 1045504
        %v531 = vrot.slane %v337, 2
        %v532 = vrot.slane %v338, 2
        %v533 = vsel %vm530, %v531, %v532
        %v534 = vrot.slane %v339, 2
        %v535 = vsel %vm530, %v532, %v534
        %v536 = vrot.slane %v340, 2
        %v537 = vsel %vm530, %v534, %v536
        %v538 = vrot.slane %v341, 2
        %v539 = vrot.slane %v342, 2
        %v540 = vsel %vm530, %v538, %v539
        %v541 = vrot.slane %v343, 2
        %v542 = vsel %vm530, %v539, %v541
        %v543 = vrot.slane %v344, 2
        %v544 = vsel %vm530, %v541, %v543
        %v545 = vrot.slane %v345, 2
        %v546 = vrot.slane %v346, 2
        %v547 = vsel %vm530, %v545, %v546
        %v548 = vrot.slane %v347, 2
        %v549 = vsel %vm530, %v546, %v548
        %v550 = vrot.slane %v348, 2
        %v551 = vsel %vm530, %v548, %v550
        %v552 = vrot.slane %v349, 2
        %v553 = vrot.slane %v350, 2
        %v554 = vsel %vm530, %v552, %v553
        %v555 = vrot.slane %v351, 2
        %v556 = vsel %vm530, %v553, %v555
        %v557 = vrot.slane %v352, 2
        %v558 = vsel %vm530, %v555, %v557
        %v559 = vrot.slane %v353, 2
        %v560 = vrot.slane %v354, 2
        %v561 = vsel %vm530, %v559, %v560
        %v562 = vrot.slane %v355, 2
        %v563 = vsel %vm530, %v560, %v562
        %v564 = vrot.slane %v356, 2
        %v565 = vsel %vm530, %v562, %v564
        %v566 = vrot.slane %v357, 2
        %v567 = vrot.slane %v358, 2
        %v568 = vsel %vm530, %v566, %v567
        %v569 = vrot.slane %v359, 2
        %v570 = vsel %vm530, %v567, %v569
        %v571 = vrot.slane %v360, 2
        %v572 = vsel %vm530, %v569, %v571
        %v573 = vrot.slane %v361, 2
        %v574 = vrot.slane %v362, 2
        %v575 = vsel %vm530, %v573, %v574
        %v576 = vrot.slane %v363, 2
        %v577 = vsel %vm530, %v574, %v576
        %v578 = vrot.slane %v364, 2
        %v579 = vsel %vm530, %v576, %v578
        %v580 = vrot.slane %v365, 2
        %v581 = vrot.slane %v366, 2
        %v582 = vsel %vm530, %v580, %v581
        %v583 = vrot.slane %v367, 2
        %v584 = vsel %vm530, %v581, %v583
        %v585 = vrot.slane %v368, 2
        %v586 = vsel %vm530, %v583, %v585
        %587 = vrot.lane.b32.xlu0 %v533, 56
        %v588 = vpop.permute.xlu0 %587
        %589 = vrot.lane.b32.xlu0 %v535, 56
        %v590 = vpop.permute.xlu0 %589
        %591 = vrot.lane.b32.xlu0 %v537, 56
        %v592 = vpop.permute.xlu0 %591
        %593 = vrot.lane.b32.xlu0 %v540, 56
        %v594 = vpop.permute.xlu0 %593
        %595 = vrot.lane.b32.xlu0 %v542, 56
        %v596 = vpop.permute.xlu0 %595
        %597 = vrot.lane.b32.xlu0 %v544, 56
        %v598 = vpop.permute.xlu0 %597
        %599 = vrot.lane.b32.xlu0 %v547, 56
        %v600 = vpop.permute.xlu0 %599
        %601 = vrot.lane.b32.xlu0 %v549, 56
        %v602 = vpop.permute.xlu0 %601
        %603 = vrot.lane.b32.xlu0 %v551, 56
        %v604 = vpop.permute.xlu0 %603
        %605 = vrot.lane.b32.xlu0 %v554, 56
        %v606 = vpop.permute.xlu0 %605
        %607 = vrot.lane.b32.xlu0 %v556, 56
        %v608 = vpop.permute.xlu0 %607
        %609 = vrot.lane.b32.xlu0 %v558, 56
        %v610 = vpop.permute.xlu0 %609
        %611 = vrot.lane.b32.xlu0 %v561, 56
        %v612 = vpop.permute.xlu0 %611
        %613 = vrot.lane.b32.xlu0 %v563, 56
        %v614 = vpop.permute.xlu0 %613
        %615 = vrot.lane.b32.xlu0 %v565, 56
        %v616 = vpop.permute.xlu0 %615
        %617 = vrot.lane.b32.xlu0 %v568, 56
        %v618 = vpop.permute.xlu0 %617
        %619 = vrot.lane.b32.xlu0 %v570, 56
        %v620 = vpop.permute.xlu0 %619
        %621 = vrot.lane.b32.xlu0 %v572, 56
        %v622 = vpop.permute.xlu0 %621
        %623 = vrot.lane.b32.xlu0 %v575, 56
        %v624 = vpop.permute.xlu0 %623
        %625 = vrot.lane.b32.xlu0 %v577, 56
        %v626 = vpop.permute.xlu0 %625
        %627 = vrot.lane.b32.xlu0 %v579, 56
        %v628 = vpop.permute.xlu0 %627
        %629 = vrot.lane.b32.xlu0 %v582, 56
        %v630 = vpop.permute.xlu0 %629
        %631 = vrot.lane.b32.xlu0 %v584, 56
        %v632 = vpop.permute.xlu0 %631
        %633 = vrot.lane.b32.xlu0 %v586, 56
        %v634 = vpop.permute.xlu0 %633
        %vm659 = vcmask 1044480
        %v660 = vrot.slane %v337, 3
        %v661 = vrot.slane %v338, 3
        %v662 = vsel %vm659, %v660, %v661
        %v663 = vrot.slane %v339, 3
        %v664 = vsel %vm659, %v661, %v663
        %v665 = vrot.slane %v340, 3
        %v666 = vsel %vm659, %v663, %v665
        %v667 = vrot.slane %v341, 3
        %v668 = vrot.slane %v342, 3
        %v669 = vsel %vm659, %v667, %v668
        %v670 = vrot.slane %v343, 3
        %v671 = vsel %vm659, %v668, %v670
        %v672 = vrot.slane %v344, 3
        %v673 = vsel %vm659, %v670, %v672
        %v674 = vrot.slane %v345, 3
        %v675 = vrot.slane %v346, 3
        %v676 = vsel %vm659, %v674, %v675
        %v677 = vrot.slane %v347, 3
        %v678 = vsel %vm659, %v675, %v677
        %v679 = vrot.slane %v348, 3
        %v680 = vsel %vm659, %v677, %v679
        %v681 = vrot.slane %v349, 3
        %v682 = vrot.slane %v350, 3
        %v683 = vsel %vm659, %v681, %v682
        %v684 = vrot.slane %v351, 3
        %v685 = vsel %vm659, %v682, %v684
        %v686 = vrot.slane %v352, 3
        %v687 = vsel %vm659, %v684, %v686
        %v688 = vrot.slane %v353, 3
        %v689 = vrot.slane %v354, 3
        %v690 = vsel %vm659, %v688, %v689
        %v691 = vrot.slane %v355, 3
        %v692 = vsel %vm659, %v689, %v691
        %v693 = vrot.slane %v356, 3
        %v694 = vsel %vm659, %v691, %v693
        %v695 = vrot.slane %v357, 3
        %v696 = vrot.slane %v358, 3
        %v697 = vsel %vm659, %v695, %v696
        %v698 = vrot.slane %v359, 3
        %v699 = vsel %vm659, %v696, %v698
        %v700 = vrot.slane %v360, 3
        %v701 = vsel %vm659, %v698, %v700
        %v702 = vrot.slane %v361, 3
        %v703 = vrot.slane %v362, 3
        %v704 = vsel %vm659, %v702, %v703
        %v705 = vrot.slane %v363, 3
        %v706 = vsel %vm659, %v703, %v705
        %v707 = vrot.slane %v364, 3
        %v708 = vsel %vm659, %v705, %v707
        %v709 = vrot.slane %v365, 3
        %v710 = vrot.slane %v366, 3
        %v711 = vsel %vm659, %v709, %v710
        %v712 = vrot.slane %v367, 3
        %v713 = vsel %vm659, %v710, %v712
        %v714 = vrot.slane %v368, 3
        %v715 = vsel %vm659, %v712, %v714
        %716 = vrot.lane.b32.xlu0 %v662, 84
        %v717 = vpop.permute.xlu0 %716
        %718 = vrot.lane.b32.xlu0 %v664, 84
        %v719 = vpop.permute.xlu0 %718
        %720 = vrot.lane.b32.xlu0 %v666, 84
        %v721 = vpop.permute.xlu0 %720
        %722 = vrot.lane.b32.xlu0 %v669, 84
        %v723 = vpop.permute.xlu0 %722
        %724 = vrot.lane.b32.xlu0 %v671, 84
        %v725 = vpop.permute.xlu0 %724
        %726 = vrot.lane.b32.xlu0 %v673, 84
        %v727 = vpop.permute.xlu0 %726
        %728 = vrot.lane.b32.xlu0 %v676, 84
        %v729 = vpop.permute.xlu0 %728
        %730 = vrot.lane.b32.xlu0 %v678, 84
        %v731 = vpop.permute.xlu0 %730
        %732 = vrot.lane.b32.xlu0 %v680, 84
        %v733 = vpop.permute.xlu0 %732
        %734 = vrot.lane.b32.xlu0 %v683, 84
        %v735 = vpop.permute.xlu0 %734
        %736 = vrot.lane.b32.xlu0 %v685, 84
        %v737 = vpop.permute.xlu0 %736
        %738 = vrot.lane.b32.xlu0 %v687, 84
        %v739 = vpop.permute.xlu0 %738
        %740 = vrot.lane.b32.xlu0 %v690, 84
        %v741 = vpop.permute.xlu0 %740
        %742 = vrot.lane.b32.xlu0 %v692, 84
        %v743 = vpop.permute.xlu0 %742
        %744 = vrot.lane.b32.xlu0 %v694, 84
        %v745 = vpop.permute.xlu0 %744
        %746 = vrot.lane.b32.xlu0 %v697, 84
        %v747 = vpop.permute.xlu0 %746
        %748 = vrot.lane.b32.xlu0 %v699, 84
        %v749 = vpop.permute.xlu0 %748
        %750 = vrot.lane.b32.xlu0 %v701, 84
        %v751 = vpop.permute.xlu0 %750
        %752 = vrot.lane.b32.xlu0 %v704, 84
        %v753 = vpop.permute.xlu0 %752
        %754 = vrot.lane.b32.xlu0 %v706, 84
        %v755 = vpop.permute.xlu0 %754
        %756 = vrot.lane.b32.xlu0 %v708, 84
        %v757 = vpop.permute.xlu0 %756
        %758 = vrot.lane.b32.xlu0 %v711, 84
        %v759 = vpop.permute.xlu0 %758
        %760 = vrot.lane.b32.xlu0 %v713, 84
        %v761 = vpop.permute.xlu0 %760
        %762 = vrot.lane.b32.xlu0 %v715, 84
        %v763 = vpop.permute.xlu0 %762
        %vm788 = vcmask 1043456
        %v789 = vrot.slane %v337, 4
        %v790 = vrot.slane %v338, 4
        %v791 = vsel %vm788, %v789, %v790
        %v792 = vrot.slane %v339, 4
        %v793 = vsel %vm788, %v790, %v792
        %v794 = vrot.slane %v340, 4
        %v795 = vsel %vm788, %v792, %v794
        %v796 = vrot.slane %v341, 4
        %v797 = vrot.slane %v342, 4
        %v798 = vsel %vm788, %v796, %v797
        %v799 = vrot.slane %v343, 4
        %v800 = vsel %vm788, %v797, %v799
        %v801 = vrot.slane %v344, 4
        %v802 = vsel %vm788, %v799, %v801
        %v803 = vrot.slane %v345, 4
        %v804 = vrot.slane %v346, 4
        %v805 = vsel %vm788, %v803, %v804
        %v806 = vrot.slane %v347, 4
        %v807 = vsel %vm788, %v804, %v806
        %v808 = vrot.slane %v348, 4
        %v809 = vsel %vm788, %v806, %v808
        %v810 = vrot.slane %v349, 4
        %v811 = vrot.slane %v350, 4
        %v812 = vsel %vm788, %v810, %v811
        %v813 = vrot.slane %v351, 4
        %v814 = vsel %vm788, %v811, %v813
        %v815 = vrot.slane %v352, 4
        %v816 = vsel %vm788, %v813, %v815
        %v817 = vrot.slane %v353, 4
        %v818 = vrot.slane %v354, 4
        %v819 = vsel %vm788, %v817, %v818
        %v820 = vrot.slane %v355, 4
        %v821 = vsel %vm788, %v818, %v820
        %v822 = vrot.slane %v356, 4
        %v823 = vsel %vm788, %v820, %v822
        %v824 = vrot.slane %v357, 4
        %v825 = vrot.slane %v358, 4
        %v826 = vsel %vm788, %v824, %v825
        %v827 = vrot.slane %v359, 4
        %v828 = vsel %vm788, %v825, %v827
        %v829 = vrot.slane %v360, 4
        %v830 = vsel %vm788, %v827, %v829
        %v831 = vrot.slane %v361, 4
        %v832 = vrot.slane %v362, 4
        %v833 = vsel %vm788, %v831, %v832
        %v834 = vrot.slane %v363, 4
        %v835 = vsel %vm788, %v832, %v834
        %v836 = vrot.slane %v364, 4
        %v837 = vsel %vm788, %v834, %v836
        %v838 = vrot.slane %v365, 4
        %v839 = vrot.slane %v366, 4
        %v840 = vsel %vm788, %v838, %v839
        %v841 = vrot.slane %v367, 4
        %v842 = vsel %vm788, %v839, %v841
        %v843 = vrot.slane %v368, 4
        %v844 = vsel %vm788, %v841, %v843
        %845 = vrot.lane.b32.xlu0 %v791, 112
        %v846 = vpop.permute.xlu0 %845
        %847 = vrot.lane.b32.xlu0 %v793, 112
        %v848 = vpop.permute.xlu0 %847
        %849 = vrot.lane.b32.xlu0 %v795, 112
        %v850 = vpop.permute.xlu0 %849
        %851 = vrot.lane.b32.xlu0 %v798, 112
        %v852 = vpop.permute.xlu0 %851
        %853 = vrot.lane.b32.xlu0 %v800, 112
        %v854 = vpop.permute.xlu0 %853
        %855 = vrot.lane.b32.xlu0 %v802, 112
        %v856 = vpop.permute.xlu0 %855
        %857 = vrot.lane.b32.xlu0 %v805, 112
        %v858 = vpop.permute.xlu0 %857
        %859 = vrot.lane.b32.xlu0 %v807, 112
        %v860 = vpop.permute.xlu0 %859
        %861 = vrot.lane.b32.xlu0 %v809, 112
        %v862 = vpop.permute.xlu0 %861
        %863 = vrot.lane.b32.xlu0 %v812, 112
        %v864 = vpop.permute.xlu0 %863
        %865 = vrot.lane.b32.xlu0 %v814, 112
        %v866 = vpop.permute.xlu0 %865
        %867 = vrot.lane.b32.xlu0 %v816, 112
        %v868 = vpop.permute.xlu0 %867
        %869 = vrot.lane.b32.xlu0 %v819, 112
        %v870 = vpop.permute.xlu0 %869
        %871 = vrot.lane.b32.xlu0 %v821, 112
        %v872 = vpop.permute.xlu0 %871
        %873 = vrot.lane.b32.xlu0 %v823, 112
        %v874 = vpop.permute.xlu0 %873
        %875 = vrot.lane.b32.xlu0 %v826, 112
        %v876 = vpop.permute.xlu0 %875
        %877 = vrot.lane.b32.xlu0 %v828, 112
        %v878 = vpop.permute.xlu0 %877
        %879 = vrot.lane.b32.xlu0 %v830, 112
        %v880 = vpop.permute.xlu0 %879
        %881 = vrot.lane.b32.xlu0 %v833, 112
        %v882 = vpop.permute.xlu0 %881
        %883 = vrot.lane.b32.xlu0 %v835, 112
        %v884 = vpop.permute.xlu0 %883
        %885 = vrot.lane.b32.xlu0 %v837, 112
        %v886 = vpop.permute.xlu0 %885
        %887 = vrot.lane.b32.xlu0 %v840, 112
        %v888 = vpop.permute.xlu0 %887
        %889 = vrot.lane.b32.xlu0 %v842, 112
        %v890 = vpop.permute.xlu0 %889
        %891 = vrot.lane.b32.xlu0 %v844, 112
        %v892 = vpop.permute.xlu0 %891
        %vm917 = vcmask 228352
        %v918 = vsel %vm917, %v337, %v459
        %v919 = vsel %vm917, %v338, %v461
        %v920 = vsel %vm917, %v339, %v463
        %v921 = vsel %vm917, %v341, %v465
        %v922 = vsel %vm917, %v342, %v467
        %v923 = vsel %vm917, %v343, %v469
        %v924 = vsel %vm917, %v345, %v471
        %v925 = vsel %vm917, %v346, %v473
        %v926 = vsel %vm917, %v347, %v475
        %v927 = vsel %vm917, %v349, %v477
        %v928 = vsel %vm917, %v350, %v479
        %v929 = vsel %vm917, %v351, %v481
        %v930 = vsel %vm917, %v353, %v483
        %v931 = vsel %vm917, %v354, %v485
        %v932 = vsel %vm917, %v355, %v487
        %v933 = vsel %vm917, %v357, %v489
        %v934 = vsel %vm917, %v358, %v491
        %v935 = vsel %vm917, %v359, %v493
        %v936 = vsel %vm917, %v361, %v495
        %v937 = vsel %vm917, %v362, %v497
        %v938 = vsel %vm917, %v363, %v499
        %v939 = vsel %vm917, %v365, %v501
        %v940 = vsel %vm917, %v366, %v503
        %v941 = vsel %vm917, %v367, %v505
        %vm942 = vcmask 457728
        %v943 = vsel %vm942, %v918, %v588
        %v944 = vsel %vm942, %v919, %v590
        %v945 = vsel %vm942, %v920, %v592
        %v946 = vsel %vm942, %v921, %v594
        %v947 = vsel %vm942, %v922, %v596
        %v948 = vsel %vm942, %v923, %v598
        %v949 = vsel %vm942, %v924, %v600
        %v950 = vsel %vm942, %v925, %v602
        %v951 = vsel %vm942, %v926, %v604
        %v952 = vsel %vm942, %v927, %v606
        %v953 = vsel %vm942, %v928, %v608
        %v954 = vsel %vm942, %v929, %v610
        %v955 = vsel %vm942, %v930, %v612
        %v956 = vsel %vm942, %v931, %v614
        %v957 = vsel %vm942, %v932, %v616
        %v958 = vsel %vm942, %v933, %v618
        %v959 = vsel %vm942, %v934, %v620
        %v960 = vsel %vm942, %v935, %v622
        %v961 = vsel %vm942, %v936, %v624
        %v962 = vsel %vm942, %v937, %v626
        %v963 = vsel %vm942, %v938, %v628
        %v964 = vsel %vm942, %v939, %v630
        %v965 = vsel %vm942, %v940, %v632
        %v966 = vsel %vm942, %v941, %v634
        %vm967 = vcmask 687104
        %v968 = vsel %vm967, %v943, %v717
        %v969 = vsel %vm967, %v944, %v719
        %v970 = vsel %vm967, %v945, %v721
        %v971 = vsel %vm967, %v946, %v723
        %v972 = vsel %vm967, %v947, %v725
        %v973 = vsel %vm967, %v948, %v727
        %v974 = vsel %vm967, %v949, %v729
        %v975 = vsel %vm967, %v950, %v731
        %v976 = vsel %vm967, %v951, %v733
        %v977 = vsel %vm967, %v952, %v735
        %v978 = vsel %vm967, %v953, %v737
        %v979 = vsel %vm967, %v954, %v739
        %v980 = vsel %vm967, %v955, %v741
        %v981 = vsel %vm967, %v956, %v743
        %v982 = vsel %vm967, %v957, %v745
        %v983 = vsel %vm967, %v958, %v747
        %v984 = vsel %vm967, %v959, %v749
        %v985 = vsel %vm967, %v960, %v751
        %v986 = vsel %vm967, %v961, %v753
        %v987 = vsel %vm967, %v962, %v755
        %v988 = vsel %vm967, %v963, %v757
        %v989 = vsel %vm967, %v964, %v759
        %v990 = vsel %vm967, %v965, %v761
        %v991 = vsel %vm967, %v966, %v763
        %vm992 = vcmask 916480
        %v993 = vsel %vm992, %v968, %v846
        %v994 = vsel %vm992, %v969, %v848
        %v995 = vsel %vm992, %v970, %v850
        %v996 = vsel %vm992, %v971, %v852
        %v997 = vsel %vm992, %v972, %v854
        %v998 = vsel %vm992, %v973, %v856
        %v999 = vsel %vm992, %v974, %v858
        %v1000 = vsel %vm992, %v975, %v860
        %v1001 = vsel %vm992, %v976, %v862
        %v1002 = vsel %vm992, %v977, %v864
        %v1003 = vsel %vm992, %v978, %v866
        %v1004 = vsel %vm992, %v979, %v868
        %v1005 = vsel %vm992, %v980, %v870
        %v1006 = vsel %vm992, %v981, %v872
        %v1007 = vsel %vm992, %v982, %v874
        %v1008 = vsel %vm992, %v983, %v876
        %v1009 = vsel %vm992, %v984, %v878
        %v1010 = vsel %vm992, %v985, %v880
        %v1011 = vsel %vm992, %v986, %v882
        %v1012 = vsel %vm992, %v987, %v884
        %v1013 = vsel %vm992, %v988, %v886
        %v1014 = vsel %vm992, %v989, %v888
        %v1015 = vsel %vm992, %v990, %v890
        %v1016 = vsel %vm992, %v991, %v892
        %v1017 = vld [vmem:[%s1] sm:$0xff]
        %v1018 = vld [vmem:[%s1 + $0x8] sm:$0xff]
        %v1019 = vld [vmem:[%s1 + $0x10] sm:$0xff]
        %v1020 = vld [vmem:[%s1 + $0x18] sm:$0xff]
        %v1021 = vld [vmem:[%s1 + $0x20] sm:$0xff]
        %v1022 = vld [vmem:[%s1 + $0x28] sm:$0xff]
        %v1023 = vld [vmem:[%s1 + $0x30] sm:$0xff]
        %v1024 = vld [vmem:[%s1 + $0x38] sm:$0xff]
        %v1025 = vld [vmem:[%s1 + $0x40] sm:$0xff]
        %v1026 = vld [vmem:[%s1 + $0x48] sm:$0xff]
        %v1027 = vld [vmem:[%s1 + $0x50] sm:$0xff]
        %v1028 = vld [vmem:[%s1 + $0x58] sm:$0xff]
        %v1029 = vld [vmem:[%s1 + $0x60] sm:$0xff]
        %v1030 = vld [vmem:[%s1 + $0x68] sm:$0xff]
        %v1031 = vld [vmem:[%s1 + $0x70] sm:$0xff]
        %v1032 = vld [vmem:[%s1 + $0x78] sm:$0xff]
        %v1033 = vld [vmem:[%s1 + $0x80] sm:$0xff]
        %v1034 = vld [vmem:[%s1 + $0x88] sm:$0xff]
        %v1035 = vld [vmem:[%s1 + $0x90] sm:$0xff]
        %v1036 = vld [vmem:[%s1 + $0x98] sm:$0xff]
        %v1037 = vld [vmem:[%s1 + $0xa0] sm:$0xff]
        %v1038 = vld [vmem:[%s1 + $0xa8] sm:$0xff]
        %v1039 = vld [vmem:[%s1 + $0xb0] sm:$0xff]
        %v1040 = vld [vmem:[%s1 + $0xb8] sm:$0xff]
        %v1041 = vld [vmem:[%s1 + $0xc0] sm:$0xff]
        %v1042 = vld [vmem:[%s1 + $0xc8] sm:$0xff]
        %v1043 = vld [vmem:[%s1 + $0xd0] sm:$0xff]
        %v1044 = vld [vmem:[%s1 + $0xd8] sm:$0xff]
        %v1045 = vld [vmem:[%s1 + $0xe0] sm:$0xff]
        %v1046 = vld [vmem:[%s1 + $0xe8] sm:$0xff]
        %v1047 = vld [vmem:[%s1 + $0xf0] sm:$0xff]
        %v1048 = vld [vmem:[%s1 + $0xf8] sm:$0xff]
        %v1049 = vld [vmem:[%s1 + $0x100] sm:$0xff]
        %v1050 = vld [vmem:[%s1 + $0x108] sm:$0xff]
        %v1051 = vld [vmem:[%s1 + $0x110] sm:$0xf]
        %v1052 = vld [vmem:[%s1 + $0x118] sm:$0xf]
        %v1053 = vld [vmem:[%s2] sm:$0x3]
        %v1055 = vperm.slane %v1053, 0
        %v1056 = vperm.slane %v1053, 1
        %vm1059 = vcmask 97280
        %v1060 = vsel %vm1059, %v846, 0
        %v1062 = vsel %vm1059, %v848, 0
        %v1064 = vsel %vm1059, %v850, 0
        %v1066 = vsel %vm1059, %v852, 0
        %v1068 = vsel %vm1059, %v854, 0
        %v1070 = vsel %vm1059, %v856, 0
        %v1072 = vsel %vm1059, %v858, 0
        %v1074 = vsel %vm1059, %v860, 0
        %v1076 = vsel %vm1059, %v862, 0
        %v1078 = vsel %vm1059, %v864, 0
        %v1080 = vsel %vm1059, %v866, 0
        %v1082 = vsel %vm1059, %v868, 0
        %v1084 = vsel %vm1059, %v870, 0
        %v1086 = vsel %vm1059, %v872, 0
        %v1088 = vsel %vm1059, %v874, 0
        %v1090 = vsel %vm1059, %v876, 0
        %v1092 = vsel %vm1059, %v878, 0
        %v1094 = vsel %vm1059, %v880, 0
        %v1096 = vsel %vm1059, %v882, 0
        %v1098 = vsel %vm1059, %v884, 0
        %v1100 = vsel %vm1059, %v886, 0
        %v1102 = vsel %vm1059, %v888, 0
        %v1104 = vsel %vm1059, %v890, 0
        %v1106 = vsel %vm1059, %v892, 0
        %v1109 = vsel %vm788, %v1051, 0
        %v1112 = vsel %vm788, %v1052, 0
        %1114 = vmatpush.msra.mxu0 %v1047
        %1115 = vmatpush.msra.mxu0 %v1045
        %1116 = vmatpush.msra.mxu0 %v1043
        %1117 = vmatpush.msra.mxu0 %v1041
        %1118 = vmatpush.msra.mxu0 %v1039
        %1119 = vmatpush.msra.mxu0 %v1037
        %1120 = vmatpush.msra.mxu0 %v1035
        %1121 = vmatpush.msra.mxu0 %v1033
        %1122 = vmatpush.msra.mxu0 %v1031
        %1123 = vmatpush.msra.mxu0 %v1029
        %1124 = vmatpush.msra.mxu0 %v1027
        %1125 = vmatpush.msra.mxu0 %v1025
        %1126 = vmatpush.msra.mxu0 %v1023
        %1127 = vmatpush.msra.mxu0 %v1021
        %1128 = vmatpush.msra.mxu0 %v1019
        %1129 = vmatpush.msra.mxu0 %v1017
        %1130 = vmatmul.f32.gmra.mxu0 %v993
        %v1131 = vpop.f32.mrf.mxu0
        %v1132 = vadd.f32 %v1055, %v1131
        %1133 = vmatmul.f32.gmra.mxu0 %v994
        %v1134 = vpop.f32.mrf.mxu0
        %v1135 = vadd.f32 %v1055, %v1134
        %1136 = vmatmul.f32.gmra.mxu0 %v995
        %v1137 = vpop.f32.mrf.mxu0
        %v1138 = vadd.f32 %v1055, %v1137
        %1139 = vmatmul.f32.gmra.mxu0 %v996
        %v1140 = vpop.f32.mrf.mxu0
        %v1141 = vadd.f32 %v1055, %v1140
        %1142 = vmatmul.f32.gmra.mxu0 %v997
        %v1143 = vpop.f32.mrf.mxu0
        %v1144 = vadd.f32 %v1055, %v1143
        %1145 = vmatmul.f32.gmra.mxu0 %v998
        %v1146 = vpop.f32.mrf.mxu0
        %v1147 = vadd.f32 %v1055, %v1146
        %1148 = vmatmul.f32.gmra.mxu0 %v999
        %v1149 = vpop.f32.mrf.mxu0
        %v1150 = vadd.f32 %v1055, %v1149
        %1151 = vmatmul.f32.gmra.mxu0 %v1000
        %v1152 = vpop.f32.mrf.mxu0
        %v1153 = vadd.f32 %v1055, %v1152
        %1154 = vmatmul.f32.gmra.mxu0 %v1001
        %v1155 = vpop.f32.mrf.mxu0
        %v1156 = vadd.f32 %v1055, %v1155
        %1157 = vmatmul.f32.gmra.mxu0 %v1002
        %v1158 = vpop.f32.mrf.mxu0
        %v1159 = vadd.f32 %v1055, %v1158
        %1160 = vmatmul.f32.gmra.mxu0 %v1003
        %v1161 = vpop.f32.mrf.mxu0
        %v1162 = vadd.f32 %v1055, %v1161
        %1163 = vmatmul.f32.gmra.mxu0 %v1004
        %v1164 = vpop.f32.mrf.mxu0
        %v1165 = vadd.f32 %v1055, %v1164
        %1166 = vmatmul.f32.gmra.mxu0 %v1005
        %v1167 = vpop.f32.mrf.mxu0
        %v1168 = vadd.f32 %v1055, %v1167
        %1169 = vmatmul.f32.gmra.mxu0 %v1006
        %v1170 = vpop.f32.mrf.mxu0
        %v1171 = vadd.f32 %v1055, %v1170
        %1172 = vmatmul.f32.gmra.mxu0 %v1007
        %v1173 = vpop.f32.mrf.mxu0
        %v1174 = vadd.f32 %v1055, %v1173
        %1175 = vmatmul.f32.gmra.mxu0 %v1008
        %v1176 = vpop.f32.mrf.mxu0
        %v1177 = vadd.f32 %v1055, %v1176
        %1178 = vmatmul.f32.gmra.mxu0 %v1009
        %v1179 = vpop.f32.mrf.mxu0
        %v1180 = vadd.f32 %v1055, %v1179
        %1181 = vmatmul.f32.gmra.mxu0 %v1010
        %v1182 = vpop.f32.mrf.mxu0
        %v1183 = vadd.f32 %v1055, %v1182
        %1184 = vmatmul.f32.gmra.mxu0 %v1011
        %v1185 = vpop.f32.mrf.mxu0
        %v1186 = vadd.f32 %v1055, %v1185
        %1187 = vmatmul.f32.gmra.mxu0 %v1012
        %v1188 = vpop.f32.mrf.mxu0
        %v1189 = vadd.f32 %v1055, %v1188
        %1190 = vmatmul.f32.gmra.mxu0 %v1013
        %v1191 = vpop.f32.mrf.mxu0
        %v1192 = vadd.f32 %v1055, %v1191
        %1193 = vmatmul.f32.gmra.mxu0 %v1014
        %v1194 = vpop.f32.mrf.mxu0
        %v1195 = vadd.f32 %v1055, %v1194
        %1196 = vmatmul.f32.gmra.mxu0 %v1015
        %v1197 = vpop.f32.mrf.mxu0
        %v1198 = vadd.f32 %v1055, %v1197
        %1199 = vmatmul.f32.gmra.mxu0 %v1016
        %v1200 = vpop.f32.mrf.mxu0
        %v1201 = vadd.f32 %v1055, %v1200
        %1202 = vdwg.mxu0
        %1203 = vmatpush.msra.mxu0 0.0
        %1204 = vmatpush.msra.mxu0 0.0
        %1205 = vmatpush.msra.mxu0 0.0
        %1206 = vmatpush.msra.mxu0 0.0
        %1207 = vmatpush.msra.mxu0 0.0
        %1208 = vmatpush.msra.mxu0 0.0
        %1209 = vmatpush.msra.mxu0 0.0
        %1210 = vmatpush.msra.mxu0 0.0
        %1211 = vmatpush.msra.mxu0 0.0
        %1212 = vmatpush.msra.mxu0 0.0
        %1213 = vmatpush.msra.mxu0 0.0
        %1214 = vmatpush.msra.mxu0 0.0
        %1215 = vmatpush.msra.mxu0 0.0
        %1216 = vmatpush.msra.mxu0 0.0
        %1217 = vmatpush.msra.mxu0 %v1109
        %1218 = vmatpush.msra.mxu0 %v1049
        %1219 = vmatmul.f32.gmra.mxu0 %v1060
        %v1220 = vpop.f32.mrf.mxu0
        %v1221 = vadd.f32 %v1132, %v1220
        %1222 = vmatmul.f32.gmra.mxu0 %v1062
        %v1223 = vpop.f32.mrf.mxu0
        %v1224 = vadd.f32 %v1135, %v1223
        %1225 = vmatmul.f32.gmra.mxu0 %v1064
        %v1226 = vpop.f32.mrf.mxu0
        %v1227 = vadd.f32 %v1138, %v1226
        %1228 = vmatmul.f32.gmra.mxu0 %v1066
        %v1229 = vpop.f32.mrf.mxu0
        %v1230 = vadd.f32 %v1141, %v1229
        %1231 = vmatmul.f32.gmra.mxu0 %v1068
        %v1232 = vpop.f32.mrf.mxu0
        %v1233 = vadd.f32 %v1144, %v1232
        %1234 = vmatmul.f32.gmra.mxu0 %v1070
        %v1235 = vpop.f32.mrf.mxu0
        %v1236 = vadd.f32 %v1147, %v1235
        %1237 = vmatmul.f32.gmra.mxu0 %v1072
        %v1238 = vpop.f32.mrf.mxu0
        %v1239 = vadd.f32 %v1150, %v1238
        %1240 = vmatmul.f32.gmra.mxu0 %v1074
        %v1241 = vpop.f32.mrf.mxu0
        %v1242 = vadd.f32 %v1153, %v1241
        %1243 = vmatmul.f32.gmra.mxu0 %v1076
        %v1244 = vpop.f32.mrf.mxu0
        %v1245 = vadd.f32 %v1156, %v1244
        %1246 = vmatmul.f32.gmra.mxu0 %v1078
        %v1247 = vpop.f32.mrf.mxu0
        %v1248 = vadd.f32 %v1159, %v1247
        %1249 = vmatmul.f32.gmra.mxu0 %v1080
        %v1250 = vpop.f32.mrf.mxu0
        %v1251 = vadd.f32 %v1162, %v1250
        %1252 = vmatmul.f32.gmra.mxu0 %v1082
        %v1253 = vpop.f32.mrf.mxu0
        %v1254 = vadd.f32 %v1165, %v1253
        %1255 = vmatmul.f32.gmra.mxu0 %v1084
        %v1256 = vpop.f32.mrf.mxu0
        %v1257 = vadd.f32 %v1168, %v1256
        %1258 = vmatmul.f32.gmra.mxu0 %v1086
        %v1259 = vpop.f32.mrf.mxu0
        %v1260 = vadd.f32 %v1171, %v1259
        %1261 = vmatmul.f32.gmra.mxu0 %v1088
        %v1262 = vpop.f32.mrf.mxu0
        %v1263 = vadd.f32 %v1174, %v1262
        %1264 = vmatmul.f32.gmra.mxu0 %v1090
        %v1265 = vpop.f32.mrf.mxu0
        %v1266 = vadd.f32 %v1177, %v1265
        %1267 = vmatmul.f32.gmra.mxu0 %v1092
        %v1268 = vpop.f32.mrf.mxu0
        %v1269 = vadd.f32 %v1180, %v1268
        %1270 = vmatmul.f32.gmra.mxu0 %v1094
        %v1271 = vpop.f32.mrf.mxu0
        %v1272 = vadd.f32 %v1183, %v1271
        %1273 = vmatmul.f32.gmra.mxu0 %v1096
        %v1274 = vpop.f32.mrf.mxu0
        %v1275 = vadd.f32 %v1186, %v1274
        %1276 = vmatmul.f32.gmra.mxu0 %v1098
        %v1277 = vpop.f32.mrf.mxu0
        %v1278 = vadd.f32 %v1189, %v1277
        %1279 = vmatmul.f32.gmra.mxu0 %v1100
        %v1280 = vpop.f32.mrf.mxu0
        %v1281 = vadd.f32 %v1192, %v1280
        %1282 = vmatmul.f32.gmra.mxu0 %v1102
        %v1283 = vpop.f32.mrf.mxu0
        %v1284 = vadd.f32 %v1195, %v1283
        %1285 = vmatmul.f32.gmra.mxu0 %v1104
        %v1286 = vpop.f32.mrf.mxu0
        %v1287 = vadd.f32 %v1198, %v1286
        %1288 = vmatmul.f32.gmra.mxu0 %v1106
        %v1289 = vpop.f32.mrf.mxu0
        %v1290 = vadd.f32 %v1201, %v1289
        %1291 = vdwg.mxu0
        %1292 = vmatpush.msra.mxu0 %v1048
        %1293 = vmatpush.msra.mxu0 %v1046
        %1294 = vmatpush.msra.mxu0 %v1044
        %1295 = vmatpush.msra.mxu0 %v1042
        %1296 = vmatpush.msra.mxu0 %v1040
        %1297 = vmatpush.msra.mxu0 %v1038
        %1298 = vmatpush.msra.mxu0 %v1036
        %1299 = vmatpush.msra.mxu0 %v1034
        %1300 = vmatpush.msra.mxu0 %v1032
        %1301 = vmatpush.msra.mxu0 %v1030
        %1302 = vmatpush.msra.mxu0 %v1028
        %1303 = vmatpush.msra.mxu0 %v1026
        %1304 = vmatpush.msra.mxu0 %v1024
        %1305 = vmatpush.msra.mxu0 %v1022
        %1306 = vmatpush.msra.mxu0 %v1020
        %1307 = vmatpush.msra.mxu0 %v1018
        %1308 = vmatmul.f32.gmra.mxu0 %v993
        %v1309 = vpop.f32.mrf.mxu0
        %v1310 = vadd.f32 %v1056, %v1309
        %1311 = vmatmul.f32.gmra.mxu0 %v994
        %v1312 = vpop.f32.mrf.mxu0
        %v1313 = vadd.f32 %v1056, %v1312
        %1314 = vmatmul.f32.gmra.mxu0 %v995
        %v1315 = vpop.f32.mrf.mxu0
        %v1316 = vadd.f32 %v1056, %v1315
        %1317 = vmatmul.f32.gmra.mxu0 %v996
        %v1318 = vpop.f32.mrf.mxu0
        %v1319 = vadd.f32 %v1056, %v1318
        %1320 = vmatmul.f32.gmra.mxu0 %v997
        %v1321 = vpop.f32.mrf.mxu0
        %v1322 = vadd.f32 %v1056, %v1321
        %1323 = vmatmul.f32.gmra.mxu0 %v998
        %v1324 = vpop.f32.mrf.mxu0
        %v1325 = vadd.f32 %v1056, %v1324
        %1326 = vmatmul.f32.gmra.mxu0 %v999
        %v1327 = vpop.f32.mrf.mxu0
        %v1328 = vadd.f32 %v1056, %v1327
        %1329 = vmatmul.f32.gmra.mxu0 %v1000
        %v1330 = vpop.f32.mrf.mxu0
        %v1331 = vadd.f32 %v1056, %v1330
        %1332 = vmatmul.f32.gmra.mxu0 %v1001
        %v1333 = vpop.f32.mrf.mxu0
        %v1334 = vadd.f32 %v1056, %v1333
        %1335 = vmatmul.f32.gmra.mxu0 %v1002
        %v1336 = vpop.f32.mrf.mxu0
        %v1337 = vadd.f32 %v1056, %v1336
        %1338 = vmatmul.f32.gmra.mxu0 %v1003
        %v1339 = vpop.f32.mrf.mxu0
        %v1340 = vadd.f32 %v1056, %v1339
        %1341 = vmatmul.f32.gmra.mxu0 %v1004
        %v1342 = vpop.f32.mrf.mxu0
        %v1343 = vadd.f32 %v1056, %v1342
        %1344 = vmatmul.f32.gmra.mxu0 %v1005
        %v1345 = vpop.f32.mrf.mxu0
        %v1346 = vadd.f32 %v1056, %v1345
        %1347 = vmatmul.f32.gmra.mxu0 %v1006
        %v1348 = vpop.f32.mrf.mxu0
        %v1349 = vadd.f32 %v1056, %v1348
        %1350 = vmatmul.f32.gmra.mxu0 %v1007
        %v1351 = vpop.f32.mrf.mxu0
        %v1352 = vadd.f32 %v1056, %v1351
        %1353 = vmatmul.f32.gmra.mxu0 %v1008
        %v1354 = vpop.f32.mrf.mxu0
        %v1355 = vadd.f32 %v1056, %v1354
        %1356 = vmatmul.f32.gmra.mxu0 %v1009
        %v1357 = vpop.f32.mrf.mxu0
        %v1358 = vadd.f32 %v1056, %v1357
        %1359 = vmatmul.f32.gmra.mxu0 %v1010
        %v1360 = vpop.f32.mrf.mxu0
        %v1361 = vadd.f32 %v1056, %v1360
        %1362 = vmatmul.f32.gmra.mxu0 %v1011
        %v1363 = vpop.f32.mrf.mxu0
        %v1364 = vadd.f32 %v1056, %v1363
        %1365 = vmatmul.f32.gmra.mxu0 %v1012
        %v1366 = vpop.f32.mrf.mxu0
        %v1367 = vadd.f32 %v1056, %v1366
        %1368 = vmatmul.f32.gmra.mxu0 %v1013
        %v1369 = vpop.f32.mrf.mxu0
        %v1370 = vadd.f32 %v1056, %v1369
        %1371 = vmatmul.f32.gmra.mxu0 %v1014
        %v1372 = vpop.f32.mrf.mxu0
        %v1373 = vadd.f32 %v1056, %v1372
        %1374 = vmatmul.f32.gmra.mxu0 %v1015
        %v1375 = vpop.f32.mrf.mxu0
        %v1376 = vadd.f32 %v1056, %v1375
        %1377 = vmatmul.f32.gmra.mxu0 %v1016
        %v1378 = vpop.f32.mrf.mxu0
        %v1379 = vadd.f32 %v1056, %v1378
        %1380 = vdwg.mxu0
        %1381 = vmatpush.msra.mxu0 0.0
        %1382 = vmatpush.msra.mxu0 0.0
        %1383 = vmatpush.msra.mxu0 0.0
        %1384 = vmatpush.msra.mxu0 0.0
        %1385 = vmatpush.msra.mxu0 0.0
        %1386 = vmatpush.msra.mxu0 0.0
        %1387 = vmatpush.msra.mxu0 0.0
        %1388 = vmatpush.msra.mxu0 0.0
        %1389 = vmatpush.msra.mxu0 0.0
        %1390 = vmatpush.msra.mxu0 0.0
        %1391 = vmatpush.msra.mxu0 0.0
        %1392 = vmatpush.msra.mxu0 0.0
        %1393 = vmatpush.msra.mxu0 0.0
        %1394 = vmatpush.msra.mxu0 0.0
        %1395 = vmatpush.msra.mxu0 %v1112
        %1396 = vmatpush.msra.mxu0 %v1050
        %1397 = vmatmul.f32.gmra.mxu0 %v1060
        %v1398 = vpop.f32.mrf.mxu0
        %v1399 = vadd.f32 %v1310, %v1398
        %1400 = vmatmul.f32.gmra.mxu0 %v1062
        %v1401 = vpop.f32.mrf.mxu0
        %v1402 = vadd.f32 %v1313, %v1401
        %1403 = vmatmul.f32.gmra.mxu0 %v1064
        %v1404 = vpop.f32.mrf.mxu0
        %v1405 = vadd.f32 %v1316, %v1404
        %1406 = vmatmul.f32.gmra.mxu0 %v1066
        %v1407 = vpop.f32.mrf.mxu0
        %v1408 = vadd.f32 %v1319, %v1407
        %1409 = vmatmul.f32.gmra.mxu0 %v1068
        %v1410 = vpop.f32.mrf.mxu0
        %v1411 = vadd.f32 %v1322, %v1410
        %1412 = vmatmul.f32.gmra.mxu0 %v1070
        %v1413 = vpop.f32.mrf.mxu0
        %v1414 = vadd.f32 %v1325, %v1413
        %1415 = vmatmul.f32.gmra.mxu0 %v1072
        %v1416 = vpop.f32.mrf.mxu0
        %v1417 = vadd.f32 %v1328, %v1416
        %1418 = vmatmul.f32.gmra.mxu0 %v1074
        %v1419 = vpop.f32.mrf.mxu0
        %v1420 = vadd.f32 %v1331, %v1419
        %1421 = vmatmul.f32.gmra.mxu0 %v1076
        %v1422 = vpop.f32.mrf.mxu0
        %v1423 = vadd.f32 %v1334, %v1422
        %1424 = vmatmul.f32.gmra.mxu0 %v1078
        %v1425 = vpop.f32.mrf.mxu0
        %v1426 = vadd.f32 %v1337, %v1425
        %1427 = vmatmul.f32.gmra.mxu0 %v1080
        %v1428 = vpop.f32.mrf.mxu0
        %v1429 = vadd.f32 %v1340, %v1428
        %1430 = vmatmul.f32.gmra.mxu0 %v1082
        %v1431 = vpop.f32.mrf.mxu0
        %v1432 = vadd.f32 %v1343, %v1431
        %1433 = vmatmul.f32.gmra.mxu0 %v1084
        %v1434 = vpop.f32.mrf.mxu0
        %v1435 = vadd.f32 %v1346, %v1434
        %1436 = vmatmul.f32.gmra.mxu0 %v1086
        %v1437 = vpop.f32.mrf.mxu0
        %v1438 = vadd.f32 %v1349, %v1437
        %1439 = vmatmul.f32.gmra.mxu0 %v1088
        %v1440 = vpop.f32.mrf.mxu0
        %v1441 = vadd.f32 %v1352, %v1440
        %1442 = vmatmul.f32.gmra.mxu0 %v1090
        %v1443 = vpop.f32.mrf.mxu0
        %v1444 = vadd.f32 %v1355, %v1443
        %1445 = vmatmul.f32.gmra.mxu0 %v1092
        %v1446 = vpop.f32.mrf.mxu0
        %v1447 = vadd.f32 %v1358, %v1446
        %1448 = vmatmul.f32.gmra.mxu0 %v1094
        %v1449 = vpop.f32.mrf.mxu0
        %v1450 = vadd.f32 %v1361, %v1449
        %1451 = vmatmul.f32.gmra.mxu0 %v1096
        %v1452 = vpop.f32.mrf.mxu0
        %v1453 = vadd.f32 %v1364, %v1452
        %1454 = vmatmul.f32.gmra.mxu0 %v1098
        %v1455 = vpop.f32.mrf.mxu0
        %v1456 = vadd.f32 %v1367, %v1455
        %1457 = vmatmul.f32.gmra.mxu0 %v1100
        %v1458 = vpop.f32.mrf.mxu0
        %v1459 = vadd.f32 %v1370, %v1458
        %1460 = vmatmul.f32.gmra.mxu0 %v1102
        %v1461 = vpop.f32.mrf.mxu0
        %v1462 = vadd.f32 %v1373, %v1461
        %1463 = vmatmul.f32.gmra.mxu0 %v1104
        %v1464 = vpop.f32.mrf.mxu0
        %v1465 = vadd.f32 %v1376, %v1464
        %1466 = vmatmul.f32.gmra.mxu0 %v1106
        %v1467 = vpop.f32.mrf.mxu0
        %v1468 = vadd.f32 %v1379, %v1467
        %1469 = vdwg.mxu0
        %v1470 = vmax.f32 %v1221, 0.0
        %v1471 = vmax.f32 %v1399, 0.0
        %v1472 = vmax.f32 %v1224, 0.0
        %v1473 = vmax.f32 %v1402, 0.0
        %v1474 = vmax.f32 %v1227, 0.0
        %v1475 = vmax.f32 %v1405, 0.0
        %v1476 = vmax.f32 %v1230, 0.0
        %v1477 = vmax.f32 %v1408, 0.0
        %v1478 = vmax.f32 %v1233, 0.0
        %v1479 = vmax.f32 %v1411, 0.0
        %v1480 = vmax.f32 %v1236, 0.0
        %v1481 = vmax.f32 %v1414, 0.0
        %v1482 = vmax.f32 %v1239, 0.0
        %v1483 = vmax.f32 %v1417, 0.0
        %v1484 = vmax.f32 %v1242, 0.0
        %v1485 = vmax.f32 %v1420, 0.0
        %v1486 = vmax.f32 %v1245, 0.0
        %v1487 = vmax.f32 %v1423, 0.0
        %v1488 = vmax.f32 %v1248, 0.0
        %v1489 = vmax.f32 %v1426, 0.0
        %v1490 = vmax.f32 %v1251, 0.0
        %v1491 = vmax.f32 %v1429, 0.0
        %v1492 = vmax.f32 %v1254, 0.0
        %v1493 = vmax.f32 %v1432, 0.0
        %v1494 = vmax.f32 %v1257, 0.0
        %v1495 = vmax.f32 %v1435, 0.0
        %v1496 = vmax.f32 %v1260, 0.0
        %v1497 = vmax.f32 %v1438, 0.0
        %v1498 = vmax.f32 %v1263, 0.0
        %v1499 = vmax.f32 %v1441, 0.0
        %v1500 = vmax.f32 %v1266, 0.0
        %v1501 = vmax.f32 %v1444, 0.0
        %v1502 = vmax.f32 %v1269, 0.0
        %v1503 = vmax.f32 %v1447, 0.0
        %v1504 = vmax.f32 %v1272, 0.0
        %v1505 = vmax.f32 %v1450, 0.0
        %v1506 = vmax.f32 %v1275, 0.0
        %v1507 = vmax.f32 %v1453, 0.0
        %v1508 = vmax.f32 %v1278, 0.0
        %v1509 = vmax.f32 %v1456, 0.0
        %v1510 = vmax.f32 %v1281, 0.0
        %v1511 = vmax.f32 %v1459, 0.0
        %v1512 = vmax.f32 %v1284, 0.0
        %v1513 = vmax.f32 %v1462, 0.0
        %v1514 = vmax.f32 %v1287, 0.0
        %v1515 = vmax.f32 %v1465, 0.0
        %v1516 = vmax.f32 %v1290, 0.0
        %v1517 = vmax.f32 %v1468, 0.0
        %1566 = vrot.lane.b32.xlu0 %v1470, 56
        %v1567 = vpop.permute.xlu0 %1566
        %1568 = vrot.lane.b32.xlu0 %v1471, 56
        %v1569 = vpop.permute.xlu0 %1568
        %1570 = vrot.lane.b32.xlu0 %v1472, 56
        %v1571 = vpop.permute.xlu0 %1570
        %1572 = vrot.lane.b32.xlu0 %v1473, 56
        %v1573 = vpop.permute.xlu0 %1572
        %1574 = vrot.lane.b32.xlu0 %v1474, 56
        %v1575 = vpop.permute.xlu0 %1574
        %1576 = vrot.lane.b32.xlu0 %v1475, 56
        %v1577 = vpop.permute.xlu0 %1576
        %1578 = vrot.lane.b32.xlu0 %v1476, 56
        %v1579 = vpop.permute.xlu0 %1578
        %1580 = vrot.lane.b32.xlu0 %v1477, 56
        %v1581 = vpop.permute.xlu0 %1580
        %1582 = vrot.lane.b32.xlu0 %v1478, 56
        %v1583 = vpop.permute.xlu0 %1582
        %1584 = vrot.lane.b32.xlu0 %v1479, 56
        %v1585 = vpop.permute.xlu0 %1584
        %1586 = vrot.lane.b32.xlu0 %v1480, 56
        %v1587 = vpop.permute.xlu0 %1586
        %1588 = vrot.lane.b32.xlu0 %v1481, 56
        %v1589 = vpop.permute.xlu0 %1588
        %1590 = vrot.lane.b32.xlu0 %v1482, 56
        %v1591 = vpop.permute.xlu0 %1590
        %1592 = vrot.lane.b32.xlu0 %v1483, 56
        %v1593 = vpop.permute.xlu0 %1592
        %1594 = vrot.lane.b32.xlu0 %v1484, 56
        %v1595 = vpop.permute.xlu0 %1594
        %1596 = vrot.lane.b32.xlu0 %v1485, 56
        %v1597 = vpop.permute.xlu0 %1596
        %1598 = vrot.lane.b32.xlu0 %v1486, 56
        %v1599 = vpop.permute.xlu0 %1598
        %1600 = vrot.lane.b32.xlu0 %v1487, 56
        %v1601 = vpop.permute.xlu0 %1600
        %1602 = vrot.lane.b32.xlu0 %v1488, 56
        %v1603 = vpop.permute.xlu0 %1602
        %1604 = vrot.lane.b32.xlu0 %v1489, 56
        %v1605 = vpop.permute.xlu0 %1604
        %1606 = vrot.lane.b32.xlu0 %v1490, 56
        %v1607 = vpop.permute.xlu0 %1606
        %1608 = vrot.lane.b32.xlu0 %v1491, 56
        %v1609 = vpop.permute.xlu0 %1608
        %1610 = vrot.lane.b32.xlu0 %v1492, 56
        %v1611 = vpop.permute.xlu0 %1610
        %1612 = vrot.lane.b32.xlu0 %v1493, 56
        %v1613 = vpop.permute.xlu0 %1612
        %1614 = vrot.lane.b32.xlu0 %v1494, 56
        %v1615 = vpop.permute.xlu0 %1614
        %1616 = vrot.lane.b32.xlu0 %v1495, 56
        %v1617 = vpop.permute.xlu0 %1616
        %1618 = vrot.lane.b32.xlu0 %v1496, 56
        %v1619 = vpop.permute.xlu0 %1618
        %1620 = vrot.lane.b32.xlu0 %v1497, 56
        %v1621 = vpop.permute.xlu0 %1620
        %1622 = vrot.lane.b32.xlu0 %v1498, 56
        %v1623 = vpop.permute.xlu0 %1622
        %1624 = vrot.lane.b32.xlu0 %v1499, 56
        %v1625 = vpop.permute.xlu0 %1624
        %1626 = vrot.lane.b32.xlu0 %v1500, 56
        %v1627 = vpop.permute.xlu0 %1626
        %1628 = vrot.lane.b32.xlu0 %v1501, 56
        %v1629 = vpop.permute.xlu0 %1628
        %1630 = vrot.lane.b32.xlu0 %v1502, 56
        %v1631 = vpop.permute.xlu0 %1630
        %1632 = vrot.lane.b32.xlu0 %v1503, 56
        %v1633 = vpop.permute.xlu0 %1632
        %1634 = vrot.lane.b32.xlu0 %v1504, 56
        %v1635 = vpop.permute.xlu0 %1634
        %1636 = vrot.lane.b32.xlu0 %v1505, 56
        %v1637 = vpop.permute.xlu0 %1636
        %1638 = vrot.lane.b32.xlu0 %v1506, 56
        %v1639 = vpop.permute.xlu0 %1638
        %1640 = vrot.lane.b32.xlu0 %v1507, 56
        %v1641 = vpop.permute.xlu0 %1640
        %1642 = vrot.lane.b32.xlu0 %v1508, 56
        %v1643 = vpop.permute.xlu0 %1642
        %1644 = vrot.lane.b32.xlu0 %v1509, 56
        %v1645 = vpop.permute.xlu0 %1644
        %1646 = vrot.lane.b32.xlu0 %v1510, 56
        %v1647 = vpop.permute.xlu0 %1646
        %1648 = vrot.lane.b32.xlu0 %v1511, 56
        %v1649 = vpop.permute.xlu0 %1648
        %1650 = vrot.lane.b32.xlu0 %v1512, 56
        %v1651 = vpop.permute.xlu0 %1650
        %1652 = vrot.lane.b32.xlu0 %v1513, 56
        %v1653 = vpop.permute.xlu0 %1652
        %1654 = vrot.lane.b32.xlu0 %v1514, 56
        %v1655 = vpop.permute.xlu0 %1654
        %1656 = vrot.lane.b32.xlu0 %v1515, 56
        %v1657 = vpop.permute.xlu0 %1656
        %1658 = vrot.lane.b32.xlu0 %v1516, 56
        %v1659 = vpop.permute.xlu0 %1658
        %1660 = vrot.lane.b32.xlu0 %v1517, 56
        %v1661 = vpop.permute.xlu0 %1660
        %v1662 = vsel %vm942, %v1567, %v1569
        %v1663 = vsel %vm942, %v1571, %v1573
        %v1664 = vsel %vm942, %v1575, %v1577
        %v1665 = vsel %vm942, %v1579, %v1581
        %v1666 = vsel %vm942, %v1583, %v1585
        %v1667 = vsel %vm942, %v1587, %v1589
        %v1668 = vsel %vm942, %v1591, %v1593
        %v1669 = vsel %vm942, %v1595, %v1597
        %v1670 = vsel %vm942, %v1599, %v1601
        %v1671 = vsel %vm942, %v1603, %v1605
        %v1672 = vsel %vm942, %v1607, %v1609
        %v1673 = vsel %vm942, %v1611, %v1613
        %v1674 = vsel %vm942, %v1615, %v1617
        %v1675 = vsel %vm942, %v1619, %v1621
        %v1676 = vsel %vm942, %v1623, %v1625
        %v1677 = vsel %vm942, %v1627, %v1629
        %v1678 = vsel %vm942, %v1631, %v1633
        %v1679 = vsel %vm942, %v1635, %v1637
        %v1680 = vsel %vm942, %v1639, %v1641
        %v1681 = vsel %vm942, %v1643, %v1645
        %v1682 = vsel %vm942, %v1647, %v1649
        %v1683 = vsel %vm942, %v1651, %v1653
        %v1684 = vsel %vm942, %v1655, %v1657
        %v1685 = vsel %vm942, %v1659, %v1661
        %v1710 = vmax.f32 %v1470, %v1662
        %v1711 = vmax.f32 %v1472, %v1663
        %v1712 = vmax.f32 %v1474, %v1664
        %v1713 = vmax.f32 %v1476, %v1665
        %v1714 = vmax.f32 %v1478, %v1666
        %v1715 = vmax.f32 %v1480, %v1667
        %v1716 = vmax.f32 %v1482, %v1668
        %v1717 = vmax.f32 %v1484, %v1669
        %v1718 = vmax.f32 %v1486, %v1670
        %v1719 = vmax.f32 %v1488, %v1671
        %v1720 = vmax.f32 %v1490, %v1672
        %v1721 = vmax.f32 %v1492, %v1673
        %v1722 = vmax.f32 %v1494, %v1674
        %v1723 = vmax.f32 %v1496, %v1675
        %v1724 = vmax.f32 %v1498, %v1676
        %v1725 = vmax.f32 %v1500, %v1677
        %v1726 = vmax.f32 %v1502, %v1678
        %v1727 = vmax.f32 %v1504, %v1679
        %v1728 = vmax.f32 %v1506, %v1680
        %v1729 = vmax.f32 %v1508, %v1681
        %v1730 = vmax.f32 %v1510, %v1682
        %v1731 = vmax.f32 %v1512, %v1683
        %v1732 = vmax.f32 %v1514, %v1684
        %v1733 = vmax.f32 %v1516, %v1685
        %vm1734 = vcmask 588800
        %1735 = vst.msk [vmem:[#allocation2] sm:$0xff] %vm1734, %v1710
        %1736 = vst.msk [vmem:[#allocation2 + $0x8] sm:$0xff] %vm1734, %v1711
        %1737 = vst.msk [vmem:[#allocation2 + $0x10] sm:$0xff] %vm1734, %v1712
        %1738 = vst.msk [vmem:[#allocation2 + $0x18] sm:$0xff] %vm1734, %v1713
        %1739 = vst.msk [vmem:[#allocation2 + $0x20] sm:$0xff] %vm1734, %v1714
        %1740 = vst.msk [vmem:[#allocation2 + $0x28] sm:$0xff] %vm1734, %v1715
        %1741 = vst.msk [vmem:[#allocation2 + $0x30] sm:$0xff] %vm1734, %v1716
        %1742 = vst.msk [vmem:[#allocation2 + $0x38] sm:$0xff] %vm1734, %v1717
        %1743 = vst.msk [vmem:[#allocation2 + $0x40] sm:$0xff] %vm1734, %v1718
        %1744 = vst.msk [vmem:[#allocation2 + $0x48] sm:$0xff] %vm1734, %v1719
        %1745 = vst.msk [vmem:[#allocation2 + $0x50] sm:$0xff] %vm1734, %v1720
        %1746 = vst.msk [vmem:[#allocation2 + $0x58] sm:$0xff] %vm1734, %v1721
        %1747 = vst.msk [vmem:[#allocation2 + $0x60] sm:$0xff] %vm1734, %v1722
        %1748 = vst.msk [vmem:[#allocation2 + $0x68] sm:$0xff] %vm1734, %v1723
        %1749 = vst.msk [vmem:[#allocation2 + $0x70] sm:$0xff] %vm1734, %v1724
        %1750 = vst.msk [vmem:[#allocation2 + $0x78] sm:$0xff] %vm1734, %v1725
        %1751 = vst.msk [vmem:[#allocation2 + $0x80] sm:$0xff] %vm1734, %v1726
        %1752 = vst.msk [vmem:[#allocation2 + $0x88] sm:$0xff] %vm1734, %v1727
        %1753 = vst.msk [vmem:[#allocation2 + $0x90] sm:$0xff] %vm1734, %v1728
        %1754 = vst.msk [vmem:[#allocation2 + $0x98] sm:$0xff] %vm1734, %v1729
        %1755 = vst.msk [vmem:[#allocation2 + $0xa0] sm:$0xff] %vm1734, %v1730
        %1756 = vst.msk [vmem:[#allocation2 + $0xa8] sm:$0xff] %vm1734, %v1731
        %1757 = vst.msk [vmem:[#allocation2 + $0xb0] sm:$0xff] %vm1734, %v1732
        %1758 = vst.msk [vmem:[#allocation2 + $0xb8] sm:$0xff] %vm1734, %v1733
        %v1759 = vld [vmem:[#allocation2] ss:$2 sm:$0xff]
        %s1760 = scalar_lea.vmem [#allocation2], 16
        %v1761 = vld [vmem:[%s1760] ss:$2 sm:$0xf]
        %s1762 = scalar_lea.vmem [#allocation2], 24
        %v1763 = vld [vmem:[%s1762] ss:$2 sm:$0xff]
        %s1764 = scalar_lea.vmem [#allocation2], 40
        %v1765 = vld [vmem:[%s1764] ss:$2 sm:$0xf]
        %s1766 = scalar_lea.vmem [#allocation2], 48
        %v1767 = vld [vmem:[%s1766] ss:$2 sm:$0xff]
        %s1768 = scalar_lea.vmem [#allocation2], 64
        %v1769 = vld [vmem:[%s1768] ss:$2 sm:$0xf]
        %s1770 = scalar_lea.vmem [#allocation2], 72
        %v1771 = vld [vmem:[%s1770] ss:$2 sm:$0xff]
        %s1772 = scalar_lea.vmem [#allocation2], 88
        %v1773 = vld [vmem:[%s1772] ss:$2 sm:$0xf]
        %s1774 = scalar_lea.vmem [#allocation2], 96
        %v1775 = vld [vmem:[%s1774] ss:$2 sm:$0xff]
        %s1776 = scalar_lea.vmem [#allocation2], 112
        %v1777 = vld [vmem:[%s1776] ss:$2 sm:$0xf]
        %s1778 = scalar_lea.vmem [#allocation2], 120
        %v1779 = vld [vmem:[%s1778] ss:$2 sm:$0xff]
        %s1780 = scalar_lea.vmem [#allocation2], 136
        %v1781 = vld [vmem:[%s1780] ss:$2 sm:$0xf]
        %s1782 = scalar_lea.vmem [#allocation2], 144
        %v1783 = vld [vmem:[%s1782] ss:$2 sm:$0xff]
        %s1784 = scalar_lea.vmem [#allocation2], 160
        %v1785 = vld [vmem:[%s1784] ss:$2 sm:$0xf]
        %s1786 = scalar_lea.vmem [#allocation2], 168
        %v1787 = vld [vmem:[%s1786] ss:$2 sm:$0xff]
        %s1788 = scalar_lea.vmem [#allocation2], 184
        %v1789 = vld [vmem:[%s1788] ss:$2 sm:$0xf]
        %s1790 = scalar_lea.vmem [#allocation2], 1
        %v1791 = vld [vmem:[%s1790] ss:$2 sm:$0xff]
        %s1792 = scalar_lea.vmem [#allocation2], 17
        %v1793 = vld [vmem:[%s1792] ss:$2 sm:$0xf]
        %s1794 = scalar_lea.vmem [#allocation2], 25
        %v1795 = vld [vmem:[%s1794] ss:$2 sm:$0xff]
        %s1796 = scalar_lea.vmem [#allocation2], 41
        %v1797 = vld [vmem:[%s1796] ss:$2 sm:$0xf]
        %s1798 = scalar_lea.vmem [#allocation2], 49
        %v1799 = vld [vmem:[%s1798] ss:$2 sm:$0xff]
        %s1800 = scalar_lea.vmem [#allocation2], 65
        %v1801 = vld [vmem:[%s1800] ss:$2 sm:$0xf]
        %s1802 = scalar_lea.vmem [#allocation2], 73
        %v1803 = vld [vmem:[%s1802] ss:$2 sm:$0xff]
        %s1804 = scalar_lea.vmem [#allocation2], 89
        %v1805 = vld [vmem:[%s1804] ss:$2 sm:$0xf]
        %s1806 = scalar_lea.vmem [#allocation2], 97
        %v1807 = vld [vmem:[%s1806] ss:$2 sm:$0xff]
        %s1808 = scalar_lea.vmem [#allocation2], 113
        %v1809 = vld [vmem:[%s1808] ss:$2 sm:$0xf]
        %s1810 = scalar_lea.vmem [#allocation2], 121
        %v1811 = vld [vmem:[%s1810] ss:$2 sm:$0xff]
        %s1812 = scalar_lea.vmem [#allocation2], 137
        %v1813 = vld [vmem:[%s1812] ss:$2 sm:$0xf]
        %s1814 = scalar_lea.vmem [#allocation2], 145
        %v1815 = vld [vmem:[%s1814] ss:$2 sm:$0xff]
        %s1816 = scalar_lea.vmem [#allocation2], 161
        %v1817 = vld [vmem:[%s1816] ss:$2 sm:$0xf]
        %s1818 = scalar_lea.vmem [#allocation2], 169
        %v1819 = vld [vmem:[%s1818] ss:$2 sm:$0xff]
        %s1820 = scalar_lea.vmem [#allocation2], 185
        %v1821 = vld [vmem:[%s1820] ss:$2 sm:$0xf]
        %v1822 = vmax.f32 %v1759, %v1791
        %v1823 = vmax.f32 %v1761, %v1793
        %v1824 = vmax.f32 %v1763, %v1795
        %v1825 = vmax.f32 %v1765, %v1797
        %v1826 = vmax.f32 %v1767, %v1799
        %v1827 = vmax.f32 %v1769, %v1801
        %v1828 = vmax.f32 %v1771, %v1803
        %v1829 = vmax.f32 %v1773, %v1805
        %v1830 = vmax.f32 %v1775, %v1807
        %v1831 = vmax.f32 %v1777, %v1809
        %v1832 = vmax.f32 %v1779, %v1811
        %v1833 = vmax.f32 %v1781, %v1813
        %v1834 = vmax.f32 %v1783, %v1815
        %v1835 = vmax.f32 %v1785, %v1817
        %v1836 = vmax.f32 %v1787, %v1819
        %v1837 = vmax.f32 %v1789, %v1821
        %v1854 = vrot.slane %v1822, 1
        %v1855 = vrot.slane %v1823, 1
        %v1856 = vsel %vm401, %v1854, %v1855
        %v1857 = vrot.slane %v1824, 1
        %v1858 = vrot.slane %v1825, 1
        %v1859 = vsel %vm401, %v1857, %v1858
        %v1860 = vrot.slane %v1826, 1
        %v1861 = vrot.slane %v1827, 1
        %v1862 = vsel %vm401, %v1860, %v1861
        %v1863 = vrot.slane %v1828, 1
        %v1864 = vrot.slane %v1829, 1
        %v1865 = vsel %vm401, %v1863, %v1864
        %v1866 = vrot.slane %v1830, 1
        %v1867 = vrot.slane %v1831, 1
        %v1868 = vsel %vm401, %v1866, %v1867
        %v1869 = vrot.slane %v1832, 1
        %v1870 = vrot.slane %v1833, 1
        %v1871 = vsel %vm401, %v1869, %v1870
        %v1872 = vrot.slane %v1834, 1
        %v1873 = vrot.slane %v1835, 1
        %v1874 = vsel %vm401, %v1872, %v1873
        %v1875 = vrot.slane %v1836, 1
        %v1876 = vrot.slane %v1837, 1
        %v1877 = vsel %vm401, %v1875, %v1876
        %1878 = vrot.lane.b32.xlu0 %v1856, 72
        %v1879 = vpop.permute.xlu0 %1878
        %1880 = vrot.lane.b32.xlu0 %v1859, 72
        %v1881 = vpop.permute.xlu0 %1880
        %1882 = vrot.lane.b32.xlu0 %v1862, 72
        %v1883 = vpop.permute.xlu0 %1882
        %1884 = vrot.lane.b32.xlu0 %v1865, 72
        %v1885 = vpop.permute.xlu0 %1884
        %1886 = vrot.lane.b32.xlu0 %v1868, 72
        %v1887 = vpop.permute.xlu0 %1886
        %1888 = vrot.lane.b32.xlu0 %v1871, 72
        %v1889 = vpop.permute.xlu0 %1888
        %1890 = vrot.lane.b32.xlu0 %v1874, 72
        %v1891 = vpop.permute.xlu0 %1890
        %1892 = vrot.lane.b32.xlu0 %v1877, 72
        %v1893 = vpop.permute.xlu0 %1892
        %v1902 = vrot.slane %v1822, 2
        %v1903 = vrot.slane %v1823, 2
        %v1904 = vsel %vm530, %v1902, %v1903
        %v1905 = vrot.slane %v1824, 2
        %v1906 = vrot.slane %v1825, 2
        %v1907 = vsel %vm530, %v1905, %v1906
        %v1908 = vrot.slane %v1826, 2
        %v1909 = vrot.slane %v1827, 2
        %v1910 = vsel %vm530, %v1908, %v1909
        %v1911 = vrot.slane %v1828, 2
        %v1912 = vrot.slane %v1829, 2
        %v1913 = vsel %vm530, %v1911, %v1912
        %v1914 = vrot.slane %v1830, 2
        %v1915 = vrot.slane %v1831, 2
        %v1916 = vsel %vm530, %v1914, %v1915
        %v1917 = vrot.slane %v1832, 2
        %v1918 = vrot.slane %v1833, 2
        %v1919 = vsel %vm530, %v1917, %v1918
        %v1920 = vrot.slane %v1834, 2
        %v1921 = vrot.slane %v1835, 2
        %v1922 = vsel %vm530, %v1920, %v1921
        %v1923 = vrot.slane %v1836, 2
        %v1924 = vrot.slane %v1837, 2
        %v1925 = vsel %vm530, %v1923, %v1924
        %1926 = vrot.lane.b32.xlu0 %v1904, 16
        %v1927 = vpop.permute.xlu0 %1926
        %1928 = vrot.lane.b32.xlu0 %v1907, 16
        %v1929 = vpop.permute.xlu0 %1928
        %1930 = vrot.lane.b32.xlu0 %v1910, 16
        %v1931 = vpop.permute.xlu0 %1930
        %1932 = vrot.lane.b32.xlu0 %v1913, 16
        %v1933 = vpop.permute.xlu0 %1932
        %1934 = vrot.lane.b32.xlu0 %v1916, 16
        %v1935 = vpop.permute.xlu0 %1934
        %1936 = vrot.lane.b32.xlu0 %v1919, 16
        %v1937 = vpop.permute.xlu0 %1936
        %1938 = vrot.lane.b32.xlu0 %v1922, 16
        %v1939 = vpop.permute.xlu0 %1938
        %1940 = vrot.lane.b32.xlu0 %v1925, 16
        %v1941 = vpop.permute.xlu0 %1940
        %v1950 = vrot.slane %v1822, 3
        %v1951 = vrot.slane %v1823, 3
        %v1952 = vsel %vm659, %v1950, %v1951
        %v1953 = vrot.slane %v1824, 3
        %v1954 = vrot.slane %v1825, 3
        %v1955 = vsel %vm659, %v1953, %v1954
        %v1956 = vrot.slane %v1826, 3
        %v1957 = vrot.slane %v1827, 3
        %v1958 = vsel %vm659, %v1956, %v1957
        %v1959 = vrot.slane %v1828, 3
        %v1960 = vrot.slane %v1829, 3
        %v1961 = vsel %vm659, %v1959, %v1960
        %v1962 = vrot.slane %v1830, 3
        %v1963 = vrot.slane %v1831, 3
        %v1964 = vsel %vm659, %v1962, %v1963
        %v1965 = vrot.slane %v1832, 3
        %v1966 = vrot.slane %v1833, 3
        %v1967 = vsel %vm659, %v1965, %v1966
        %v1968 = vrot.slane %v1834, 3
        %v1969 = vrot.slane %v1835, 3
        %v1970 = vsel %vm659, %v1968, %v1969
        %v1971 = vrot.slane %v1836, 3
        %v1972 = vrot.slane %v1837, 3
        %v1973 = vsel %vm659, %v1971, %v1972
        %1974 = vrot.lane.b32.xlu0 %v1952, 88
        %v1975 = vpop.permute.xlu0 %1974
        %1976 = vrot.lane.b32.xlu0 %v1955, 88
        %v1977 = vpop.permute.xlu0 %1976
        %1978 = vrot.lane.b32.xlu0 %v1958, 88
        %v1979 = vpop.permute.xlu0 %1978
        %1980 = vrot.lane.b32.xlu0 %v1961, 88
        %v1981 = vpop.permute.xlu0 %1980
        %1982 = vrot.lane.b32.xlu0 %v1964, 88
        %v1983 = vpop.permute.xlu0 %1982
        %1984 = vrot.lane.b32.xlu0 %v1967, 88
        %v1985 = vpop.permute.xlu0 %1984
        %1986 = vrot.lane.b32.xlu0 %v1970, 88
        %v1987 = vpop.permute.xlu0 %1986
        %1988 = vrot.lane.b32.xlu0 %v1973, 88
        %v1989 = vpop.permute.xlu0 %1988
        %v1998 = vrot.slane %v1822, 4
        %v1999 = vrot.slane %v1823, 4
        %v2000 = vsel %vm788, %v1998, %v1999
        %v2001 = vrot.slane %v1824, 4
        %v2002 = vrot.slane %v1825, 4
        %v2003 = vsel %vm788, %v2001, %v2002
        %v2004 = vrot.slane %v1826, 4
        %v2005 = vrot.slane %v1827, 4
        %v2006 = vsel %vm788, %v2004, %v2005
        %v2007 = vrot.slane %v1828, 4
        %v2008 = vrot.slane %v1829, 4
        %v2009 = vsel %vm788, %v2007, %v2008
        %v2010 = vrot.slane %v1830, 4
        %v2011 = vrot.slane %v1831, 4
        %v2012 = vsel %vm788, %v2010, %v2011
        %v2013 = vrot.slane %v1832, 4
        %v2014 = vrot.slane %v1833, 4
        %v2015 = vsel %vm788, %v2013, %v2014
        %v2016 = vrot.slane %v1834, 4
        %v2017 = vrot.slane %v1835, 4
        %v2018 = vsel %vm788, %v2016, %v2017
        %v2019 = vrot.slane %v1836, 4
        %v2020 = vrot.slane %v1837, 4
        %v2021 = vsel %vm788, %v2019, %v2020
        %2022 = vrot.lane.b32.xlu0 %v2000, 32
        %v2023 = vpop.permute.xlu0 %2022
        %2024 = vrot.lane.b32.xlu0 %v2003, 32
        %v2025 = vpop.permute.xlu0 %2024
        %2026 = vrot.lane.b32.xlu0 %v2006, 32
        %v2027 = vpop.permute.xlu0 %2026
        %2028 = vrot.lane.b32.xlu0 %v2009, 32
        %v2029 = vpop.permute.xlu0 %2028
        %2030 = vrot.lane.b32.xlu0 %v2012, 32
        %v2031 = vpop.permute.xlu0 %2030
        %2032 = vrot.lane.b32.xlu0 %v2015, 32
        %v2033 = vpop.permute.xlu0 %2032
        %2034 = vrot.lane.b32.xlu0 %v2018, 32
        %v2035 = vpop.permute.xlu0 %2034
        %2036 = vrot.lane.b32.xlu0 %v2021, 32
        %v2037 = vpop.permute.xlu0 %2036
        %v2046 = vsel %vm1734, %v1822, %v1879
        %v2047 = vsel %vm1734, %v1824, %v1881
        %v2048 = vsel %vm1734, %v1826, %v1883
        %v2049 = vsel %vm1734, %v1828, %v1885
        %v2050 = vsel %vm1734, %v1830, %v1887
        %v2051 = vsel %vm1734, %v1832, %v1889
        %v2052 = vsel %vm1734, %v1834, %v1891
        %v2053 = vsel %vm1734, %v1836, %v1893
        %vm2054 = vcmask 130048
        %v2055 = vsel %vm2054, %v1879, %v1927
        %v2056 = vsel %vm2054, %v1881, %v1929
        %v2057 = vsel %vm2054, %v1883, %v1931
        %v2058 = vsel %vm2054, %v1885, %v1933
        %v2059 = vsel %vm2054, %v1887, %v1935
        %v2060 = vsel %vm2054, %v1889, %v1937
        %v2061 = vsel %vm2054, %v1891, %v1939
        %v2062 = vsel %vm2054, %v1893, %v1941
        %vm2063 = vcmask 719872
        %v2064 = vsel %vm2063, %v2055, %v1975
        %v2065 = vsel %vm2063, %v2056, %v1977
        %v2066 = vsel %vm2063, %v2057, %v1979
        %v2067 = vsel %vm2063, %v2058, %v1981
        %v2068 = vsel %vm2063, %v2059, %v1983
        %v2069 = vsel %vm2063, %v2060, %v1985
        %v2070 = vsel %vm2063, %v2061, %v1987
        %v2071 = vsel %vm2063, %v2062, %v1989
        %vm2072 = vcmask 261120
        %v2073 = vsel %vm2072, %v1975, %v2023
        %v2074 = vsel %vm2072, %v1977, %v2025
        %v2075 = vsel %vm2072, %v1979, %v2027
        %v2076 = vsel %vm2072, %v1981, %v2029
        %v2077 = vsel %vm2072, %v1983, %v2031
        %v2078 = vsel %vm2072, %v1985, %v2033
        %v2079 = vsel %vm2072, %v1987, %v2035
        %v2080 = vsel %vm2072, %v1989, %v2037
        %v2081 = vpack.c.bf16 %v2047, %v2046
        %v2082 = vpack.c.bf16 %v2065, %v2064
        %v2083 = vpack.c.bf16 %v2074, %v2073
        %v2084 = vpack.c.bf16 %v2049, %v2048
        %v2085 = vpack.c.bf16 %v2067, %v2066
        %v2086 = vpack.c.bf16 %v2076, %v2075
        %v2087 = vpack.c.bf16 %v2051, %v2050
        %v2088 = vpack.c.bf16 %v2069, %v2068
        %v2089 = vpack.c.bf16 %v2078, %v2077
        %v2090 = vpack.c.bf16 %v2053, %v2052
        %v2091 = vpack.c.bf16 %v2071, %v2070
        %v2092 = vpack.c.bf16 %v2080, %v2079
        %v2093 = vld [vmem:[%s3] sm:$0xf]
        %v2094 = vld [vmem:[%s3 + $0x4] sm:$0xf]
        %v2095 = vld [vmem:[%s3 + $0x8] sm:$0xf]
        %v2096 = vld [vmem:[%s3 + $0xc] sm:$0xf]
        %v2097 = vld [vmem:[%s3 + $0x10] sm:$0xf]
        %v2098 = vld [vmem:[%s3 + $0x14] sm:$0xf]
        %v2099 = vld [vmem:[%s3 + $0x18] sm:$0xf]
        %v2100 = vld [vmem:[%s3 + $0x1c] sm:$0xf]
        %v2101 = vld [vmem:[%s3 + $0x20] sm:$0xf]
        %v2102 = vld [vmem:[%s3 + $0x24] sm:$0xf]
        %v2103 = vld [vmem:[%s3 + $0x28] sm:$0xf]
        %v2104 = vld [vmem:[%s3 + $0x2c] sm:$0xf]
        %v2105 = vld [vmem:[%s3 + $0x30] sm:$0xf]
        %v2106 = vld [vmem:[%s3 + $0x34] sm:$0xf]
        %v2107 = vld [vmem:[%s3 + $0x38] sm:$0xf]
        %v2108 = vld [vmem:[%s3 + $0x3c] sm:$0xf]
        %v2109 = vld [vmem:[%s3 + $0x40] sm:$0xf]
        %v2110 = vld [vmem:[%s3 + $0x44] sm:$0xf]
        %v2111 = vld [vmem:[%s3 + $0x48] sm:$0xf]
        %v2112 = vld [vmem:[%s3 + $0x4c] sm:$0xf]
        %v2113 = vld [vmem:[%s3 + $0x50] sm:$0xf]
        %v2114 = vld [vmem:[%s3 + $0x54] sm:$0xf]
        %v2115 = vld [vmem:[%s3 + $0x58] sm:$0xf]
        %v2116 = vld [vmem:[%s3 + $0x5c] sm:$0xf]
        %v2117 = vld [vmem:[%s3 + $0x60] sm:$0xf]
        %v2118 = vld [vmem:[%s3 + $0x64] sm:$0xf]
        %v2119 = vld [vmem:[%s3 + $0x68] sm:$0xf]
        %v2120 = vld [vmem:[%s3 + $0x6c] sm:$0xf]
        %v2121 = vld [vmem:[%s3 + $0x70] sm:$0xf]
        %v2122 = vld [vmem:[%s3 + $0x74] sm:$0xf]
        %v2123 = vld [vmem:[%s3 + $0x78] sm:$0xf]
        %v2124 = vld [vmem:[%s3 + $0x7c] sm:$0xf]
        %v2125 = vld [vmem:[%s3 + $0x80] sm:$0xf]
        %v2126 = vld [vmem:[%s3 + $0x84] sm:$0xf]
        %v2127 = vld [vmem:[%s3 + $0x88] sm:$0xf]
        %v2128 = vld [vmem:[%s3 + $0x8c] sm:$0xf]
        %v2129 = vld [vmem:[%s3 + $0x90] sm:$0xf]
        %v2130 = vld [vmem:[%s3 + $0x94] sm:$0xf]
        %v2131 = vld [vmem:[%s3 + $0x98] sm:$0xf]
        %v2132 = vld [vmem:[%s3 + $0x9c] sm:$0xf]
        %v2133 = vld [vmem:[%s3 + $0xa0] sm:$0xf]
        %v2134 = vld [vmem:[%s3 + $0xa4] sm:$0xf]
        %v2135 = vld [vmem:[%s3 + $0xa8] sm:$0xf]
        %v2136 = vld [vmem:[%s3 + $0xac] sm:$0xf]
        %v2137 = vld [vmem:[%s3 + $0xb0] sm:$0xf]
        %v2138 = vld [vmem:[%s4] sm:$0x1]
        %v2140 = vperm.slane %v2138, 0
        %v2187 = vunpack.c.l.b16 %v2093
        %v2188 = vunpack.c.l.b16 %v2094
        %v2189 = vunpack.c.l.b16 %v2095
        %v2190 = vunpack.c.l.b16 %v2096
        %v2191 = vunpack.c.l.b16 %v2097
        %v2192 = vunpack.c.l.b16 %v2098
        %v2193 = vunpack.c.l.b16 %v2099
        %v2194 = vunpack.c.l.b16 %v2100
        %v2195 = vunpack.c.l.b16 %v2101
        %v2196 = vunpack.c.l.b16 %v2102
        %v2197 = vunpack.c.l.b16 %v2103
        %v2198 = vunpack.c.l.b16 %v2104
        %v2199 = vunpack.c.l.b16 %v2105
        %v2200 = vunpack.c.l.b16 %v2106
        %v2201 = vunpack.c.l.b16 %v2107
        %v2202 = vunpack.c.l.b16 %v2108
        %v2203 = vunpack.c.l.b16 %v2109
        %v2204 = vunpack.c.l.b16 %v2110
        %v2205 = vunpack.c.l.b16 %v2111
        %v2206 = vunpack.c.l.b16 %v2112
        %v2207 = vunpack.c.l.b16 %v2113
        %v2208 = vunpack.c.l.b16 %v2114
        %v2209 = vunpack.c.l.b16 %v2115
        %v2210 = vunpack.c.l.b16 %v2116
        %v2211 = vunpack.c.l.b16 %v2117
        %v2212 = vunpack.c.l.b16 %v2118
        %v2213 = vunpack.c.l.b16 %v2119
        %v2214 = vunpack.c.l.b16 %v2120
        %v2215 = vunpack.c.l.b16 %v2121
        %v2216 = vunpack.c.l.b16 %v2122
        %v2217 = vunpack.c.l.b16 %v2123
        %v2218 = vunpack.c.l.b16 %v2124
        %v2219 = vunpack.c.l.b16 %v2125
        %v2220 = vunpack.c.l.b16 %v2126
        %v2221 = vunpack.c.l.b16 %v2127
        %v2222 = vunpack.c.l.b16 %v2128
        %v2223 = vunpack.c.l.b16 %v2129
        %v2224 = vunpack.c.l.b16 %v2130
        %v2225 = vunpack.c.l.b16 %v2131
        %v2226 = vunpack.c.l.b16 %v2132
        %v2227 = vunpack.c.l.b16 %v2133
        %v2228 = vunpack.c.l.b16 %v2134
        %v2229 = vunpack.c.l.b16 %v2135
        %v2230 = vunpack.c.l.b16 %v2136
        %v2231 = vunpack.c.l.b16 %v2137
        %v2232 = vpack.c.b16 %v2188, %v2187
        %v2233 = vpack.c.b16 %v2190, %v2189
        %v2234 = vpack.c.b16 %v2192, %v2191
        %v2235 = vpack.c.b16 %v2194, %v2193
        %v2236 = vpack.c.b16 %v2196, %v2195
        %v2237 = vpack.c.b16 %v2198, %v2197
        %v2238 = vpack.c.b16 %v2200, %v2199
        %v2239 = vpack.c.b16 %v2202, %v2201
        %v2240 = vpack.c.b16 %v2204, %v2203
        %v2241 = vpack.c.b16 %v2206, %v2205
        %v2242 = vpack.c.b16 %v2208, %v2207
        %v2243 = vpack.c.b16 %v2210, %v2209
        %v2244 = vpack.c.b16 %v2212, %v2211
        %v2245 = vpack.c.b16 %v2214, %v2213
        %v2246 = vpack.c.b16 %v2216, %v2215
        %v2247 = vpack.c.b16 %v2218, %v2217
        %v2248 = vpack.c.b16 %v2220, %v2219
        %v2249 = vpack.c.b16 %v2222, %v2221
        %v2250 = vpack.c.b16 %v2224, %v2223
        %v2251 = vpack.c.b16 %v2226, %v2225
        %v2252 = vpack.c.b16 %v2228, %v2227
        %v2253 = vpack.c.b16 %v2230, %v2229
        %v2254 = vpack.c.b16 %v2231, %v2231
        %vm2277 = vcmask 850944
        %v2279 = vsel %vm2277, %v2083, 0
        %v2282 = vsel %vm2277, %v2086, 0
        %v2285 = vsel %vm2277, %v2089, 0
        %v2288 = vsel %vm2277, %v2092, 0
        %v2291 = vsel %vm788, %v2254, 0
        %2293 = vmatpush.bf16.msra.mxu0 %v2239
        %2294 = vmatpush.bf16.msra.mxu0 %v2238
        %2295 = vmatpush.bf16.msra.mxu0 %v2237
        %2296 = vmatpush.bf16.msra.mxu0 %v2236
        %2297 = vmatpush.bf16.msra.mxu0 %v2235
        %2298 = vmatpush.bf16.msra.mxu0 %v2234
        %2299 = vmatpush.bf16.msra.mxu0 %v2233
        %2300 = vmatpush.bf16.msra.mxu0 %v2232
        %2301 = vmatmul.bf16.gmra.mxu0 %v2081
        %v2302 = vpop.f32.mrf.mxu0
        %v2303 = vadd.f32 %v2140, %v2302
        %v2304 = vpop.f32.mrf.mxu0
        %v2305 = vadd.f32 %v2140, %v2304
        %2306 = vmatmul.bf16.gmra.mxu0 %v2084
        %v2307 = vpop.f32.mrf.mxu0
        %v2308 = vadd.f32 %v2140, %v2307
        %v2309 = vpop.f32.mrf.mxu0
        %v2310 = vadd.f32 %v2140, %v2309
        %2311 = vmatmul.bf16.gmra.mxu0 %v2087
        %v2312 = vpop.f32.mrf.mxu0
        %v2313 = vadd.f32 %v2140, %v2312
        %v2314 = vpop.f32.mrf.mxu0
        %v2315 = vadd.f32 %v2140, %v2314
        %2316 = vmatmul.bf16.gmra.mxu0 %v2090
        %v2317 = vpop.f32.mrf.mxu0
        %v2318 = vadd.f32 %v2140, %v2317
        %v2319 = vpop.f32.mrf.mxu0
        %v2320 = vadd.f32 %v2140, %v2319
        %2321 = vdwg.mxu0
        %2322 = vmatpush.bf16.msra.mxu0 %v2247
        %2323 = vmatpush.bf16.msra.mxu0 %v2246
        %2324 = vmatpush.bf16.msra.mxu0 %v2245
        %2325 = vmatpush.bf16.msra.mxu0 %v2244
        %2326 = vmatpush.bf16.msra.mxu0 %v2243
        %2327 = vmatpush.bf16.msra.mxu0 %v2242
        %2328 = vmatpush.bf16.msra.mxu0 %v2241
        %2329 = vmatpush.bf16.msra.mxu0 %v2240
        %2330 = vmatmul.bf16.gmra.mxu0 %v2082
        %v2331 = vpop.f32.mrf.mxu0
        %v2332 = vadd.f32 %v2303, %v2331
        %v2333 = vpop.f32.mrf.mxu0
        %v2334 = vadd.f32 %v2305, %v2333
        %2335 = vmatmul.bf16.gmra.mxu0 %v2085
        %v2336 = vpop.f32.mrf.mxu0
        %v2337 = vadd.f32 %v2308, %v2336
        %v2338 = vpop.f32.mrf.mxu0
        %v2339 = vadd.f32 %v2310, %v2338
        %2340 = vmatmul.bf16.gmra.mxu0 %v2088
        %v2341 = vpop.f32.mrf.mxu0
        %v2342 = vadd.f32 %v2313, %v2341
        %v2343 = vpop.f32.mrf.mxu0
        %v2344 = vadd.f32 %v2315, %v2343
        %2345 = vmatmul.bf16.gmra.mxu0 %v2091
        %v2346 = vpop.f32.mrf.mxu0
        %v2347 = vadd.f32 %v2318, %v2346
        %v2348 = vpop.f32.mrf.mxu0
        %v2349 = vadd.f32 %v2320, %v2348
        %2350 = vdwg.mxu0
        %2351 = vmatpush.bf16.msra.mxu0 0
        %2352 = vmatpush.bf16.msra.mxu0 %v2291
        %2353 = vmatpush.bf16.msra.mxu0 %v2253
        %2354 = vmatpush.bf16.msra.mxu0 %v2252
        %2355 = vmatpush.bf16.msra.mxu0 %v2251
        %2356 = vmatpush.bf16.msra.mxu0 %v2250
        %2357 = vmatpush.bf16.msra.mxu0 %v2249
        %2358 = vmatpush.bf16.msra.mxu0 %v2248
        %2359 = vmatmul.bf16.gmra.mxu0 %v2279
        %v2360 = vpop.f32.mrf.mxu0
        %v2361 = vadd.f32 %v2332, %v2360
        %v2362 = vpop.f32.mrf.mxu0
        %v2363 = vadd.f32 %v2334, %v2362
        %2364 = vmatmul.bf16.gmra.mxu0 %v2282
        %v2365 = vpop.f32.mrf.mxu0
        %v2366 = vadd.f32 %v2337, %v2365
        %v2367 = vpop.f32.mrf.mxu0
        %v2368 = vadd.f32 %v2339, %v2367
        %2369 = vmatmul.bf16.gmra.mxu0 %v2285
        %v2370 = vpop.f32.mrf.mxu0
        %v2371 = vadd.f32 %v2342, %v2370
        %v2372 = vpop.f32.mrf.mxu0
        %v2373 = vadd.f32 %v2344, %v2372
        %2374 = vmatmul.bf16.gmra.mxu0 %v2288
        %v2375 = vpop.f32.mrf.mxu0
        %v2376 = vadd.f32 %v2347, %v2375
        %v2377 = vpop.f32.mrf.mxu0
        %v2378 = vadd.f32 %v2349, %v2377
        %2379 = vdwg.mxu0
        %v2380 = vmax.f32 %v2361, 0.0
        %v2381 = vmax.f32 %v2363, 0.0
        %v2382 = vmax.f32 %v2366, 0.0
        %v2383 = vmax.f32 %v2368, 0.0
        %v2384 = vmax.f32 %v2371, 0.0
        %v2385 = vmax.f32 %v2373, 0.0
        %v2386 = vmax.f32 %v2376, 0.0
        %v2387 = vmax.f32 %v2378, 0.0
        %2396 = vrot.lane.b32.xlu0 %v2380, 64
        %v2397 = vpop.permute.xlu0 %2396
        %2398 = vrot.lane.b32.xlu0 %v2381, 64
        %v2399 = vpop.permute.xlu0 %2398
        %2400 = vrot.lane.b32.xlu0 %v2382, 64
        %v2401 = vpop.permute.xlu0 %2400
        %2402 = vrot.lane.b32.xlu0 %v2383, 64
        %v2403 = vpop.permute.xlu0 %2402
        %2404 = vrot.lane.b32.xlu0 %v2384, 64
        %v2405 = vpop.permute.xlu0 %2404
        %2406 = vrot.lane.b32.xlu0 %v2385, 64
        %v2407 = vpop.permute.xlu0 %2406
        %2408 = vrot.lane.b32.xlu0 %v2386, 64
        %v2409 = vpop.permute.xlu0 %2408
        %2410 = vrot.lane.b32.xlu0 %v2387, 64
        %v2411 = vpop.permute.xlu0 %2410
        %v2420 = vmax.f32 %v2380, %v2397
        %v2421 = vmax.f32 %v2381, %v2399
        %v2422 = vmax.f32 %v2382, %v2401
        %v2423 = vmax.f32 %v2383, %v2403
        %v2424 = vmax.f32 %v2384, %v2405
        %v2425 = vmax.f32 %v2385, %v2407
        %v2426 = vmax.f32 %v2386, %v2409
        %v2427 = vmax.f32 %v2387, %v2411
        %v2436 = vrot.slane %v2420, 1
        %v2437 = vrot.slane %v2421, 1
        %v2438 = vrot.slane %v2422, 1
        %v2439 = vrot.slane %v2423, 1
        %v2440 = vrot.slane %v2424, 1
        %v2441 = vrot.slane %v2425, 1
        %v2442 = vrot.slane %v2426, 1
        %v2443 = vrot.slane %v2427, 1
        %v2452 = vmax.f32 %v2420, %v2436
        %v2453 = vmax.f32 %v2421, %v2437
        %v2454 = vmax.f32 %v2422, %v2438
        %v2455 = vmax.f32 %v2423, %v2439
        %v2456 = vmax.f32 %v2424, %v2440
        %v2457 = vmax.f32 %v2425, %v2441
        %v2458 = vmax.f32 %v2426, %v2442
        %v2459 = vmax.f32 %v2427, %v2443
        %v2468 = vrot.slane %v2453, 7
        %vm2469 = vcmask 1041409
        %v2470 = vsel %vm2469, %v2468, %v2452
        %v2471 = vrot.slane %v2454, 6
        %vm2472 = vcmask 1042434
        %v2473 = vsel %vm2472, %v2471, %v2470
        %v2474 = vrot.slane %v2455, 5
        %vm2475 = vcmask 1043459
        %v2476 = vsel %vm2475, %v2474, %v2473
        %v2477 = vrot.slane %v2456, 4
        %vm2478 = vcmask 1044484
        %v2479 = vsel %vm2478, %v2477, %v2476
        %v2480 = vrot.slane %v2457, 3
        %vm2481 = vcmask 1045509
        %v2482 = vsel %vm2481, %v2480, %v2479
        %v2483 = vrot.slane %v2458, 2
        %vm2484 = vcmask 1046534
        %v2485 = vsel %vm2484, %v2483, %v2482
        %v2486 = vrot.slane %v2459, 1
        %vm2487 = vcmask 1047559
        %v2488 = vsel %vm2487, %v2486, %v2485
        %v2490 = vrot.slane %v2452, 2
        %v2491 = vrot.slane %v2453, 1
        %v2492 = vsel %vm2469, %v2491, %v2490
        %v2493 = vsel %vm2472, %v2454, %v2492
        %v2494 = vrot.slane %v2455, 7
        %v2495 = vsel %vm2475, %v2494, %v2493
        %v2496 = vrot.slane %v2456, 6
        %v2497 = vsel %vm2478, %v2496, %v2495
        %v2498 = vrot.slane %v2457, 5
        %v2499 = vsel %vm2481, %v2498, %v2497
        %v2500 = vrot.slane %v2458, 4
        %v2501 = vsel %vm2484, %v2500, %v2499
        %v2502 = vrot.slane %v2459, 3
        %v2503 = vsel %vm2487, %v2502, %v2501
        %2504 = vrot.lane.b32.xlu0 %v2503, 64
        %v2505 = vpop.permute.xlu0 %2504
        %v2507 = vrot.slane %v2452, 4
        %v2508 = vrot.slane %v2453, 3
        %v2509 = vsel %vm2469, %v2508, %v2507
        %v2510 = vrot.slane %v2454, 2
        %v2511 = vsel %vm2472, %v2510, %v2509
        %v2512 = vrot.slane %v2455, 1
        %v2513 = vsel %vm2475, %v2512, %v2511
        %v2514 = vsel %vm2478, %v2456, %v2513
        %v2515 = vrot.slane %v2457, 7
        %v2516 = vsel %vm2481, %v2515, %v2514
        %v2517 = vrot.slane %v2458, 6
        %v2518 = vsel %vm2484, %v2517, %v2516
        %v2519 = vrot.slane %v2459, 5
        %v2520 = vsel %vm2487, %v2519, %v2518
        %v2522 = vrot.slane %v2452, 6
        %v2523 = vrot.slane %v2453, 5
        %v2524 = vsel %vm2469, %v2523, %v2522
        %v2525 = vrot.slane %v2454, 4
        %v2526 = vsel %vm2472, %v2525, %v2524
        %v2527 = vrot.slane %v2455, 3
        %v2528 = vsel %vm2475, %v2527, %v2526
        %v2529 = vrot.slane %v2456, 2
        %v2530 = vsel %vm2478, %v2529, %v2528
        %v2531 = vrot.slane %v2457, 1
        %v2532 = vsel %vm2481, %v2531, %v2530
        %v2533 = vsel %vm2484, %v2458, %v2532
        %v2534 = vrot.slane %v2459, 7
        %v2535 = vsel %vm2487, %v2534, %v2533
        %2536 = vrot.lane.b32.xlu0 %v2535, 64
        %v2537 = vpop.permute.xlu0 %2536
        %vm2539 = vcmask 523264
        %v2540 = vsel %vm2539, %v2488, %v2505
        %v2541 = vsel %vm2539, %v2520, %v2537
        %v2542 = vpack.c.bf16 %v2540, %v2540
        %v2543 = vpack.c.bf16 %v2541, %v2541
        %v2544 = vld [vmem:[%s5] sm:$0xf]
        %v2545 = vld [vmem:[%s5 + $0x4] sm:$0xf]
        %v2546 = vld [vmem:[%s5 + $0x8] sm:$0xf]
        %v2547 = vld [vmem:[%s5 + $0xc] sm:$0xf]
        %v2548 = vld [vmem:[%s5 + $0x10] sm:$0xf]
        %v2549 = vld [vmem:[%s5 + $0x14] sm:$0xf]
        %v2550 = vld [vmem:[%s5 + $0x18] sm:$0xf]
        %v2551 = vld [vmem:[%s5 + $0x1c] sm:$0xf]
        %v2552 = vld [vmem:[%s5 + $0x20] sm:$0xf]
        %v2553 = vld [vmem:[%s5 + $0x24] sm:$0xf]
        %v2554 = vld [vmem:[%s5 + $0x28] sm:$0xf]
        %v2555 = vld [vmem:[%s5 + $0x2c] sm:$0xf]
        %v2556 = vld [vmem:[%s5 + $0x30] sm:$0xf]
        %v2557 = vld [vmem:[%s5 + $0x34] sm:$0xf]
        %v2558 = vld [vmem:[%s5 + $0x38] sm:$0xf]
        %v2559 = vld [vmem:[%s5 + $0x3c] sm:$0xf]
        %v2560 = vld [vmem:[%s5 + $0x40] sm:$0xf]
        %v2561 = vld [vmem:[%s5 + $0x44] sm:$0xf]
        %v2562 = vld [vmem:[%s5 + $0x48] sm:$0xf]
        %v2563 = vld [vmem:[%s5 + $0x4c] sm:$0xf]
        %v2564 = vld [vmem:[%s5 + $0x50] sm:$0xf]
        %v2565 = vld [vmem:[%s5 + $0x54] sm:$0xf]
        %v2566 = vld [vmem:[%s5 + $0x58] sm:$0xf]
        %v2567 = vld [vmem:[%s5 + $0x5c] sm:$0xf]
        %v2568 = vld [vmem:[%s5 + $0x60] sm:$0xf]
        %v2569 = vld [vmem:[%s5 + $0x64] sm:$0xf]
        %v2570 = vld [vmem:[%s5 + $0x68] sm:$0xf]
        %v2571 = vld [vmem:[%s5 + $0x6c] sm:$0xf]
        %v2572 = vld [vmem:[%s5 + $0x70] sm:$0xf]
        %v2573 = vld [vmem:[%s5 + $0x74] sm:$0xf]
        %v2574 = vld [vmem:[%s5 + $0x78] sm:$0xf]
        %v2575 = vld [vmem:[%s5 + $0x7c] sm:$0xf]
        %v2576 = vld [vmem:[%s6] sm:$0x1]
        %v2578 = vperm.slane %v2576, 0
        %v2612 = vunpack.c.l.b16 %v2544
        %v2613 = vunpack.c.l.b16 %v2545
        %v2614 = vunpack.c.l.b16 %v2546
        %v2615 = vunpack.c.l.b16 %v2547
        %v2616 = vunpack.c.l.b16 %v2548
        %v2617 = vunpack.c.l.b16 %v2549
        %v2618 = vunpack.c.l.b16 %v2550
        %v2619 = vunpack.c.l.b16 %v2551
        %v2620 = vunpack.c.l.b16 %v2552
        %v2621 = vunpack.c.l.b16 %v2553
        %v2622 = vunpack.c.l.b16 %v2554
        %v2623 = vunpack.c.l.b16 %v2555
        %v2624 = vunpack.c.l.b16 %v2556
        %v2625 = vunpack.c.l.b16 %v2557
        %v2626 = vunpack.c.l.b16 %v2558
        %v2627 = vunpack.c.l.b16 %v2559
        %v2628 = vunpack.c.l.b16 %v2560
        %v2629 = vunpack.c.l.b16 %v2561
        %v2630 = vunpack.c.l.b16 %v2562
        %v2631 = vunpack.c.l.b16 %v2563
        %v2632 = vunpack.c.l.b16 %v2564
        %v2633 = vunpack.c.l.b16 %v2565
        %v2634 = vunpack.c.l.b16 %v2566
        %v2635 = vunpack.c.l.b16 %v2567
        %v2636 = vunpack.c.l.b16 %v2568
        %v2637 = vunpack.c.l.b16 %v2569
        %v2638 = vunpack.c.l.b16 %v2570
        %v2639 = vunpack.c.l.b16 %v2571
        %v2640 = vunpack.c.l.b16 %v2572
        %v2641 = vunpack.c.l.b16 %v2573
        %v2642 = vunpack.c.l.b16 %v2574
        %v2643 = vunpack.c.l.b16 %v2575
        %v2644 = vpack.c.b16 %v2613, %v2612
        %v2645 = vpack.c.b16 %v2615, %v2614
        %v2646 = vpack.c.b16 %v2617, %v2616
        %v2647 = vpack.c.b16 %v2619, %v2618
        %v2648 = vpack.c.b16 %v2621, %v2620
        %v2649 = vpack.c.b16 %v2623, %v2622
        %v2650 = vpack.c.b16 %v2625, %v2624
        %v2651 = vpack.c.b16 %v2627, %v2626
        %v2652 = vpack.c.b16 %v2629, %v2628
        %v2653 = vpack.c.b16 %v2631, %v2630
        %v2654 = vpack.c.b16 %v2633, %v2632
        %v2655 = vpack.c.b16 %v2635, %v2634
        %v2656 = vpack.c.b16 %v2637, %v2636
        %v2657 = vpack.c.b16 %v2639, %v2638
        %v2658 = vpack.c.b16 %v2641, %v2640
        %v2659 = vpack.c.b16 %v2643, %v2642
        %2676 = vmatpush.bf16.msra.mxu0 %v2651
        %2677 = vmatpush.bf16.msra.mxu0 %v2650
        %2678 = vmatpush.bf16.msra.mxu0 %v2649
        %2679 = vmatpush.bf16.msra.mxu0 %v2648
        %2680 = vmatpush.bf16.msra.mxu0 %v2647
        %2681 = vmatpush.bf16.msra.mxu0 %v2646
        %2682 = vmatpush.bf16.msra.mxu0 %v2645
        %2683 = vmatpush.bf16.msra.mxu0 %v2644
        %2684 = vmatmul.bf16.gmra.mxu0 %v2542
        %v2685 = vpop.f32.mrf.mxu0
        %v2686 = vadd.f32 %v2578, %v2685
        %v2687 = vpop.f32.mrf.mxu0
        %2688 = vdwg.mxu0
        %2689 = vmatpush.bf16.msra.mxu0 %v2659
        %2690 = vmatpush.bf16.msra.mxu0 %v2658
        %2691 = vmatpush.bf16.msra.mxu0 %v2657
        %2692 = vmatpush.bf16.msra.mxu0 %v2656
        %2693 = vmatpush.bf16.msra.mxu0 %v2655
        %2694 = vmatpush.bf16.msra.mxu0 %v2654
        %2695 = vmatpush.bf16.msra.mxu0 %v2653
        %2696 = vmatpush.bf16.msra.mxu0 %v2652
        %2697 = vmatmul.bf16.gmra.mxu0 %v2543
        %v2698 = vpop.f32.mrf.mxu0
        %v2699 = vadd.f32 %v2686, %v2698
        %v2700 = vpop.f32.mrf.mxu0
        %2701 = vdwg.mxu0
        %v2702 = vmax.f32 %v2699, 0.0
        %v2703 = vpack.c.bf16 %v2702, %v2702
        %v2704 = vld [vmem:[%s7] sm:$0xf]
        %v2705 = vld [vmem:[%s7 + $0x4] sm:$0xf]
        %v2706 = vld [vmem:[%s7 + $0x8] sm:$0xf]
        %v2707 = vld [vmem:[%s7 + $0xc] sm:$0xf]
        %v2708 = vld [vmem:[%s7 + $0x10] sm:$0xf]
        %v2709 = vld [vmem:[%s7 + $0x14] sm:$0xf]
        %v2710 = vld [vmem:[%s7 + $0x18] sm:$0xf]
        %v2711 = vld [vmem:[%s7 + $0x1c] sm:$0xf]
        %v2712 = vld [vmem:[%s7 + $0x20] sm:$0xf]
        %v2713 = vld [vmem:[%s7 + $0x24] sm:$0xf]
        %v2714 = vld [vmem:[%s7 + $0x28] sm:$0xf]
        %v2715 = vld [vmem:[%s7 + $0x2c] sm:$0xf]
        %v2716 = vld [vmem:[%s7 + $0x30] sm:$0xf]
        %v2717 = vld [vmem:[%s7 + $0x34] sm:$0xf]
        %v2718 = vld [vmem:[%s7 + $0x38] sm:$0xf]
        %v2719 = vld [vmem:[%s8] sm:$0x1]
        %v2721 = vperm.slane %v2719, 0
        %v2738 = vunpack.c.l.b16 %v2704
        %v2739 = vunpack.c.l.b16 %v2705
        %v2740 = vunpack.c.l.b16 %v2706
        %v2741 = vunpack.c.l.b16 %v2707
        %v2742 = vunpack.c.l.b16 %v2708
        %v2743 = vunpack.c.l.b16 %v2709
        %v2744 = vunpack.c.l.b16 %v2710
        %v2745 = vunpack.c.l.b16 %v2711
        %v2746 = vunpack.c.l.b16 %v2712
        %v2747 = vunpack.c.l.b16 %v2713
        %v2748 = vunpack.c.l.b16 %v2714
        %v2749 = vunpack.c.l.b16 %v2715
        %v2750 = vunpack.c.l.b16 %v2716
        %v2751 = vunpack.c.l.b16 %v2717
        %v2752 = vunpack.c.l.b16 %v2718
        %v2753 = vpack.c.b16 %v2739, %v2738
        %v2754 = vpack.c.b16 %v2741, %v2740
        %v2755 = vpack.c.b16 %v2743, %v2742
        %v2756 = vpack.c.b16 %v2745, %v2744
        %v2757 = vpack.c.b16 %v2747, %v2746
        %v2758 = vpack.c.b16 %v2749, %v2748
        %v2759 = vpack.c.b16 %v2751, %v2750
        %v2760 = vpack.c.b16 %v2752, %v2752
        %vm2768 = vcmask 982016
        %v2770 = vsel %vm2768, %v2703, 0
        %v2773 = vsel %vm788, %v2760, 0
        %2775 = vmatpush.bf16.msra.mxu0 %v2773
        %2776 = vmatpush.bf16.msra.mxu0 %v2759
        %2777 = vmatpush.bf16.msra.mxu0 %v2758
        %2778 = vmatpush.bf16.msra.mxu0 %v2757
        %2779 = vmatpush.bf16.msra.mxu0 %v2756
        %2780 = vmatpush.bf16.msra.mxu0 %v2755
        %2781 = vmatpush.bf16.msra.mxu0 %v2754
        %2782 = vmatpush.bf16.msra.mxu0 %v2753
        %2783 = vmatmul.bf16.gmra.mxu0 %v2770
        %v2784 = vpop.f32.mrf.mxu0
        %v2785 = vadd.f32 %v2721, %v2784
        %v2786 = vpop.f32.mrf.mxu0
        %2787 = vdwg.mxu0
        %2788 = vst [vmem:[%s328] sm:$0xff] %v2785
        %s2789 = sand.u32 %s225, 1
        %s2790 = scalar_lea.sflag [#allocation4], %s2789
        %s2791 = sand.u32 %s225, 1
        %s2792 = smul.addr %s2791, 8
        %s2793 = scalar_lea.vmem [#allocation3], %s2792
        // Predicated region
        $region57: #{_lambda_.1} parent=55 // pred_check
          %p2794 = pneg %p235
        $region58: #{_lambda_.1} parent=55 // pred_check_branch
          %2796 = sbr.rel (%p2794) target = $region60
        $region59: #{_lambda_.1} parent=55 // pred_region
          %2798 = vsyncadd %s2790, 0
          %s2799 = smul.addr %s23, 8
          %s2800 = scalar_lea.hbm %s9, %s2799
          %s2802 = sshll.u32 %s2793, 4
          %s2803 = int_to_ptr.vmem [resolvable:$true] %s2802
          %s2804 = sshll.u32 %s2800, 4
          %s2805 = int_to_ptr.hbm [resolvable:$true] %s2804
          %2807 = dma.vmem_to_hbm [thread:$0]  %s2803, 128, %s2805, %s2790
        $region60: #{_lambda_.1} parent=55 // pred_fallthru
          _
      $region56: #{_lambda_.1} parent=5 // pred_fallthru
        _
      %p2808 = scmp.le.s32.totalorder 2, %s18
      // Predicated region
      $region61: #{_lambda_.1} parent=5 // pred_check
        %p2809 = pneg %p2808
      $region62: #{_lambda_.1} parent=5 // pred_check_branch
        %2811 = sbr.rel (%p2809) target = $region64
      $region63: #{_lambda_.1} parent=5 // pred_region
        %s2812 = ssub.s32 %s18, 2
        // Predicated region
        $region65: #{_lambda_.1} parent=63 // pred_check
          %p2813 = pneg %p241
        $region66: #{_lambda_.1} parent=63 // pred_check_branch
          %2815 = sbr.rel (%p2813) target = $region68
        $region67: #{_lambda_.1} parent=63 // pred_region
          %s2816 = sand.u32 %s226, 1
          %s2817 = scalar_lea.sflag [#allocation4], %s2816
          %s2818 = sand.u32 %s226, 1
          %s2819 = smul.addr %s2818, 8
          %s2820 = scalar_lea.vmem [#allocation3], %s2819
          %2822 = dma.done %s2817, 128
        $region68: #{_lambda_.1} parent=63 // pred_fallthru
          _
      $region64: #{_lambda_.1} parent=5 // pred_fallthru
        _
    $region6: #{_lambda_.1} parent=1 // loop_footer
      %s22 = sadd.s32 1, %s18
    $region7: #{_lambda_.1} parent=1 // loop_footer_branch
      %17 = sbr.rel target = $region3
    $region8: #{_lambda_.1} parent=1 // loop_exit
      _
    %2823 = vsyncpa [#allocation4], 1
    %s2824 = scalar_lea.sflag [#allocation4], 1
    %2825 = vsyncpa %s2824, 1

</llo_original>
